<compile_context>
chip_gen: v6e
topology: v6e:2x2x1
jax: 0.10.0
libtpu: 0.0.40
codegen_flags: <defaults>
</compile_context>

<pallas_src>
import functools

import jax
import jax.numpy as jnp
from jax.experimental import pallas as pl
from jax.experimental.pallas import tpu as pltpu


# act(z) at the start of decode() == act after en4, so: ReLU after layers 0..6,
# none after the final layer (de4).
_ACT_AFTER = (True, True, True, True, True, True, True, False)


def ae_kernel(x_ref, *refs):
    """Whole AE forward for one batch tile, batch-on-lanes layout.

    x_ref : (F, tile_b)  -- features on sublanes, batch on lanes
    refs  : w1, b1, ..., w8, b8, o_ref
    w_i   : (out_i, in_i)  (PyTorch Linear layout),  b_i : (out_i, 1) f32
    o_ref : (F, tile_b)
    """
    o_ref = refs[-1]
    params = refs[:-1]

    h = x_ref[...].astype(jnp.float32)
    for layer in range(8):
        w_ref = params[2 * layer]
        b_ref = params[2 * layer + 1]
        w = w_ref[...]
        # (out, in) @ (in, tile_b) -> (out, tile_b); batch stays on the lane
        # axis so every intermediate (and the output) is lane-dense.
        y = jnp.dot(w, h.astype(w.dtype), preferred_element_type=jnp.float32)
        y = y + b_ref[...].astype(jnp.float32)        # broadcast over lanes
        h = jnp.maximum(y, 0.0) if _ACT_AFTER[layer] else y

    o_ref[...] = h.astype(o_ref.dtype)


def _layer_dims(n_features, latent, neurons):
    return (
        (n_features, neurons[0]),   # en1
        (neurons[0], neurons[1]),   # en2
        (neurons[1], neurons[2]),   # en3
        (neurons[2], latent),       # en4
        (latent, neurons[2]),       # de1
        (neurons[2], neurons[1]),   # de2
        (neurons[1], neurons[0]),   # de3
        (neurons[0], n_features),   # de4
    )


def init_ae_params(key, n_features, latent, neurons, param_dtype=jnp.float32):
    """PyTorch-style init: U(-1/sqrt(fan_in), 1/sqrt(fan_in)).

    Weights stored in PyTorch layout (out_features, in_features) in
    `param_dtype` (f32 or bf16); biases as (out_features, 1) f32."""
    params = []
    for (fan_in, fan_out) in _layer_dims(n_features, latent, neurons):
        key, kw, kb = jax.random.split(key, 3)
        bound = 1.0 / (fan_in ** 0.5)
        w = jax.random.uniform(kw, (fan_out, fan_in), jnp.float32, -bound, bound)
        b = jax.random.uniform(kb, (fan_out, 1), jnp.float32, -bound, bound)
        params.append((w.astype(param_dtype), b))
    return params


@functools.partial(jax.jit, static_argnames=("tile_b",))
def ae_forward(x, params, *, tile_b=256):
    B, F = x.shape
    # Batch-on-lanes tiling: whole batch as one tile if small, otherwise
    # lane-aligned (multiple of 128) sub-batch tiles.
    if B <= tile_b:
        tile_b = B
    else:
        assert B % tile_b == 0 and tile_b % 128 == 0, (
            "B must be a multiple of tile_b and tile_b a multiple of 128")

    flat = []
    for (w, b) in params:
        flat.extend([w, b])

    x_t = x.T                                   # (F, B): batch on lane axis

    x_spec = pl.BlockSpec((F, tile_b), lambda i: (0, i))
    param_specs = [pl.BlockSpec(p.shape, lambda i: (0, 0)) for p in flat]
    out_spec = pl.BlockSpec((F, tile_b), lambda i: (0, i))

    flops = 2 * B * sum(int(w.shape[0]) * int(w.shape[1]) for (w, _) in params)
    bytes_accessed = (
        x.size * x.dtype.itemsize            # input
        + B * F * x.dtype.itemsize           # output
        + sum(w.size * w.dtype.itemsize + b.size * b.dtype.itemsize
              for (w, b) in params)          # resident params
    )

    out_t = pl.pallas_call(
        ae_kernel,
        out_shape=jax.ShapeDtypeStruct((F, B), x.dtype),
        grid=(B // tile_b,),
        in_specs=[x_spec] + param_specs,
        out_specs=out_spec,
        compiler_params=pltpu.CompilerParams(
            dimension_semantics=("parallel",),
        ),
        cost_estimate=pl.CostEstimate(
            flops=flops, transcendentals=0, bytes_accessed=bytes_accessed),
    )(x_t, *flat)

    return out_t.T                              # back to (B, F)


def ae_forward_ref(x, params):
    """Plain-JAX reference mirroring the PyTorch forward exactly."""
    h = x.astype(jnp.float32)
    for layer, (w, b) in enumerate(params):
        y = jnp.dot(h.astype(w.dtype), w.T,
                    preferred_element_type=jnp.float32) + b.reshape(1, -1)
        h = jnp.maximum(y, 0.0) if _ACT_AFTER[layer] else y
    return h.astype(x.dtype)


if __name__ == "__main__":
    # Small shapes consistent with the module's forward.
    n_features = 32
    neurons = (64, 32, 16)
    latent = 8
    batch = 512          # two lane-aligned tiles of 256 -> >=2 grid steps (v7x)

    key = jax.random.PRNGKey(0)
    key_x, key_p = jax.random.split(key)
    x = jax.random.normal(key_x, (batch, n_features), dtype=jnp.float32)

    # f32 weights: tight check vs the plain-JAX reference.
    params_f32 = init_ae_params(key_p, n_features, latent, neurons,
                                param_dtype=jnp.float32)
    out = jax.block_until_ready(ae_forward(x, params_f32, tile_b=256))
    ref = ae_forward_ref(x, params_f32)
    assert out.shape == (batch, n_features)
    assert jnp.allclose(out, ref, atol=1e-4, rtol=1e-4), "f32 mismatch vs reference"

    # bf16 weights (recommended on v6e/v7x): MXU-native inputs, f32 accumulate.
    params_bf16 = init_ae_params(key_p, n_features, latent, neurons,
                                 param_dtype=jnp.bfloat16)
    out_bf16 = jax.block_until_ready(ae_forward(x, params_bf16, tile_b=256))
    ref_bf16 = ae_forward_ref(x, params_bf16)
    assert out_bf16.shape == (batch, n_features)
    assert jnp.allclose(out_bf16, ref_bf16, atol=5e-2, rtol=5e-2), \
        "bf16 mismatch vs reference"

    print("KERNEL_OK")
</pallas_src>

<mosaic_0001>
module attributes {stable_mosaic.version = 11 : i64} {
  func.func @ae_kernel(%arg0: i32, %arg1: memref<32x256xf32, #tpu.memory_space<vmem>>, %arg2: memref<64x32xf32, #tpu.memory_space<vmem>>, %arg3: memref<64x1xf32, #tpu.memory_space<vmem>>, %arg4: memref<32x64xf32, #tpu.memory_space<vmem>>, %arg5: memref<32x1xf32, #tpu.memory_space<vmem>>, %arg6: memref<16x32xf32, #tpu.memory_space<vmem>>, %arg7: memref<16x1xf32, #tpu.memory_space<vmem>>, %arg8: memref<8x16xf32, #tpu.memory_space<vmem>>, %arg9: memref<8x1xf32, #tpu.memory_space<vmem>>, %arg10: memref<16x8xf32, #tpu.memory_space<vmem>>, %arg11: memref<16x1xf32, #tpu.memory_space<vmem>>, %arg12: memref<32x16xf32, #tpu.memory_space<vmem>>, %arg13: memref<32x1xf32, #tpu.memory_space<vmem>>, %arg14: memref<64x32xf32, #tpu.memory_space<vmem>>, %arg15: memref<64x1xf32, #tpu.memory_space<vmem>>, %arg16: memref<32x64xf32, #tpu.memory_space<vmem>>, %arg17: memref<32x1xf32, #tpu.memory_space<vmem>>, %arg18: memref<32x256xf32, #tpu.memory_space<vmem>>) attributes {dimension_semantics = [#tpu.dimension_semantics<parallel>], iteration_bounds = array<i64: 2>, scalar_prefetch = 0 : i64, scratch_operands = 0 : i64, tpu.core_type = #tpu.core_type<tc>, window_params = [{transform_indices = @transform_0, window_bounds = array<i64: 32, 256>}, {pipeline_mode = #tpu.pipeline_mode<synchronous>, transform_indices = @transform_1, window_bounds = array<i64: 64, 32>}, {pipeline_mode = #tpu.pipeline_mode<synchronous>, transform_indices = @transform_2, window_bounds = array<i64: 64, 1>}, {pipeline_mode = #tpu.pipeline_mode<synchronous>, transform_indices = @transform_3, window_bounds = array<i64: 32, 64>}, {pipeline_mode = #tpu.pipeline_mode<synchronous>, transform_indices = @transform_4, window_bounds = array<i64: 32, 1>}, {pipeline_mode = #tpu.pipeline_mode<synchronous>, transform_indices = @transform_5, window_bounds = array<i64: 16, 32>}, {pipeline_mode = #tpu.pipeline_mode<synchronous>, transform_indices = @transform_6, window_bounds = array<i64: 16, 1>}, {pipeline_mode = #tpu.pipeline_mode<synchronous>, transform_indices = @transform_7, window_bounds = array<i64: 8, 16>}, {pipeline_mode = #tpu.pipeline_mode<synchronous>, transform_indices = @transform_8, window_bounds = array<i64: 8, 1>}, {pipeline_mode = #tpu.pipeline_mode<synchronous>, transform_indices = @transform_9, window_bounds = array<i64: 16, 8>}, {pipeline_mode = #tpu.pipeline_mode<synchronous>, transform_indices = @transform_10, window_bounds = array<i64: 16, 1>}, {pipeline_mode = #tpu.pipeline_mode<synchronous>, transform_indices = @transform_11, window_bounds = array<i64: 32, 16>}, {pipeline_mode = #tpu.pipeline_mode<synchronous>, transform_indices = @transform_12, window_bounds = array<i64: 32, 1>}, {pipeline_mode = #tpu.pipeline_mode<synchronous>, transform_indices = @transform_13, window_bounds = array<i64: 64, 32>}, {pipeline_mode = #tpu.pipeline_mode<synchronous>, transform_indices = @transform_14, window_bounds = array<i64: 64, 1>}, {pipeline_mode = #tpu.pipeline_mode<synchronous>, transform_indices = @transform_15, window_bounds = array<i64: 32, 64>}, {pipeline_mode = #tpu.pipeline_mode<synchronous>, transform_indices = @transform_16, window_bounds = array<i64: 32, 1>}, {transform_indices = @transform_17, window_bounds = array<i64: 32, 256>}]} {
    %c0 = arith.constant 0 : index
    %c0_0 = arith.constant 0 : index
    %0 = vector.load %arg1[%c0, %c0_0] : memref<32x256xf32, #tpu.memory_space<vmem>>, vector<32x256xf32>
    %c0_1 = arith.constant 0 : index
    %c0_2 = arith.constant 0 : index
    %1 = vector.load %arg2[%c0_1, %c0_2] : memref<64x32xf32, #tpu.memory_space<vmem>>, vector<64x32xf32>
    %cst = arith.constant dense<0.000000e+00> : vector<64x256xf32>
    %2 = tpu.matmul %1, %0, %cst {dimension_numbers = #tpu.dot_dimension_numbers<[1], [0], [0], [1], [0, 0, 1, 1], [], []>} : vector<64x32xf32>, vector<32x256xf32>, vector<64x256xf32> -> vector<64x256xf32>
    %c0_3 = arith.constant 0 : index
    %c0_4 = arith.constant 0 : index
    %3 = vector.load %arg3[%c0_3, %c0_4] : memref<64x1xf32, #tpu.memory_space<vmem>>, vector<64x1xf32>
    %4 = vector.broadcast %3 : vector<64x1xf32> to vector<64x256xf32>
    %5 = arith.addf %2, %4 : vector<64x256xf32>
    %cst_5 = arith.constant 0.000000e+00 : f32
    %6 = vector.broadcast %cst_5 : f32 to vector<64x256xf32>
    %7 = arith.maximumf %5, %6 : vector<64x256xf32>
    %c0_6 = arith.constant 0 : index
    %c0_7 = arith.constant 0 : index
    %8 = vector.load %arg4[%c0_6, %c0_7] : memref<32x64xf32, #tpu.memory_space<vmem>>, vector<32x64xf32>
    %cst_8 = arith.constant dense<0.000000e+00> : vector<32x256xf32>
    %9 = tpu.matmul %8, %7, %cst_8 {dimension_numbers = #tpu.dot_dimension_numbers<[1], [0], [0], [1], [0, 0, 1, 1], [], []>} : vector<32x64xf32>, vector<64x256xf32>, vector<32x256xf32> -> vector<32x256xf32>
    %c0_9 = arith.constant 0 : index
    %c0_10 = arith.constant 0 : index
    %10 = vector.load %arg5[%c0_9, %c0_10] : memref<32x1xf32, #tpu.memory_space<vmem>>, vector<32x1xf32>
    %11 = vector.broadcast %10 : vector<32x1xf32> to vector<32x256xf32>
    %12 = arith.addf %9, %11 : vector<32x256xf32>
    %cst_11 = arith.constant 0.000000e+00 : f32
    %13 = vector.broadcast %cst_11 : f32 to vector<32x256xf32>
    %14 = arith.maximumf %12, %13 : vector<32x256xf32>
    %c0_12 = arith.constant 0 : index
    %c0_13 = arith.constant 0 : index
    %15 = vector.load %arg6[%c0_12, %c0_13] : memref<16x32xf32, #tpu.memory_space<vmem>>, vector<16x32xf32>
    %cst_14 = arith.constant dense<0.000000e+00> : vector<16x256xf32>
    %16 = tpu.matmul %15, %14, %cst_14 {dimension_numbers = #tpu.dot_dimension_numbers<[1], [0], [0], [1], [0, 0, 1, 1], [], []>} : vector<16x32xf32>, vector<32x256xf32>, vector<16x256xf32> -> vector<16x256xf32>
    %c0_15 = arith.constant 0 : index
    %c0_16 = arith.constant 0 : index
    %17 = vector.load %arg7[%c0_15, %c0_16] : memref<16x1xf32, #tpu.memory_space<vmem>>, vector<16x1xf32>
    %18 = vector.broadcast %17 : vector<16x1xf32> to vector<16x256xf32>
    %19 = arith.addf %16, %18 : vector<16x256xf32>
    %cst_17 = arith.constant 0.000000e+00 : f32
    %20 = vector.broadcast %cst_17 : f32 to vector<16x256xf32>
    %21 = arith.maximumf %19, %20 : vector<16x256xf32>
    %c0_18 = arith.constant 0 : index
    %c0_19 = arith.constant 0 : index
    %22 = vector.load %arg8[%c0_18, %c0_19] : memref<8x16xf32, #tpu.memory_space<vmem>>, vector<8x16xf32>
    %cst_20 = arith.constant dense<0.000000e+00> : vector<8x256xf32>
    %23 = tpu.matmul %22, %21, %cst_20 {dimension_numbers = #tpu.dot_dimension_numbers<[1], [0], [0], [1], [0, 0, 1, 1], [], []>} : vector<8x16xf32>, vector<16x256xf32>, vector<8x256xf32> -> vector<8x256xf32>
    %c0_21 = arith.constant 0 : index
    %c0_22 = arith.constant 0 : index
    %24 = vector.load %arg9[%c0_21, %c0_22] : memref<8x1xf32, #tpu.memory_space<vmem>>, vector<8x1xf32>
    %25 = vector.broadcast %24 : vector<8x1xf32> to vector<8x256xf32>
    %26 = arith.addf %23, %25 : vector<8x256xf32>
    %cst_23 = arith.constant 0.000000e+00 : f32
    %27 = vector.broadcast %cst_23 : f32 to vector<8x256xf32>
    %28 = arith.maximumf %26, %27 : vector<8x256xf32>
    %c0_24 = arith.constant 0 : index
    %c0_25 = arith.constant 0 : index
    %29 = vector.load %arg10[%c0_24, %c0_25] : memref<16x8xf32, #tpu.memory_space<vmem>>, vector<16x8xf32>
    %cst_26 = arith.constant dense<0.000000e+00> : vector<16x256xf32>
    %30 = tpu.matmul %29, %28, %cst_26 {dimension_numbers = #tpu.dot_dimension_numbers<[1], [0], [0], [1], [0, 0, 1, 1], [], []>} : vector<16x8xf32>, vector<8x256xf32>, vector<16x256xf32> -> vector<16x256xf32>
    %c0_27 = arith.constant 0 : index
    %c0_28 = arith.constant 0 : index
    %31 = vector.load %arg11[%c0_27, %c0_28] : memref<16x1xf32, #tpu.memory_space<vmem>>, vector<16x1xf32>
    %32 = vector.broadcast %31 : vector<16x1xf32> to vector<16x256xf32>
    %33 = arith.addf %30, %32 : vector<16x256xf32>
    %cst_29 = arith.constant 0.000000e+00 : f32
    %34 = vector.broadcast %cst_29 : f32 to vector<16x256xf32>
    %35 = arith.maximumf %33, %34 : vector<16x256xf32>
    %c0_30 = arith.constant 0 : index
    %c0_31 = arith.constant 0 : index
    %36 = vector.load %arg12[%c0_30, %c0_31] : memref<32x16xf32, #tpu.memory_space<vmem>>, vector<32x16xf32>
    %cst_32 = arith.constant dense<0.000000e+00> : vector<32x256xf32>
    %37 = tpu.matmul %36, %35, %cst_32 {dimension_numbers = #tpu.dot_dimension_numbers<[1], [0], [0], [1], [0, 0, 1, 1], [], []>} : vector<32x16xf32>, vector<16x256xf32>, vector<32x256xf32> -> vector<32x256xf32>
    %c0_33 = arith.constant 0 : index
    %c0_34 = arith.constant 0 : index
    %38 = vector.load %arg13[%c0_33, %c0_34] : memref<32x1xf32, #tpu.memory_space<vmem>>, vector<32x1xf32>
    %39 = vector.broadcast %38 : vector<32x1xf32> to vector<32x256xf32>
    %40 = arith.addf %37, %39 : vector<32x256xf32>
    %cst_35 = arith.constant 0.000000e+00 : f32
    %41 = vector.broadcast %cst_35 : f32 to vector<32x256xf32>
    %42 = arith.maximumf %40, %41 : vector<32x256xf32>
    %c0_36 = arith.constant 0 : index
    %c0_37 = arith.constant 0 : index
    %43 = vector.load %arg14[%c0_36, %c0_37] : memref<64x32xf32, #tpu.memory_space<vmem>>, vector<64x32xf32>
    %cst_38 = arith.constant dense<0.000000e+00> : vector<64x256xf32>
    %44 = tpu.matmul %43, %42, %cst_38 {dimension_numbers = #tpu.dot_dimension_numbers<[1], [0], [0], [1], [0, 0, 1, 1], [], []>} : vector<64x32xf32>, vector<32x256xf32>, vector<64x256xf32> -> vector<64x256xf32>
    %c0_39 = arith.constant 0 : index
    %c0_40 = arith.constant 0 : index
    %45 = vector.load %arg15[%c0_39, %c0_40] : memref<64x1xf32, #tpu.memory_space<vmem>>, vector<64x1xf32>
    %46 = vector.broadcast %45 : vector<64x1xf32> to vector<64x256xf32>
    %47 = arith.addf %44, %46 : vector<64x256xf32>
    %cst_41 = arith.constant 0.000000e+00 : f32
    %48 = vector.broadcast %cst_41 : f32 to vector<64x256xf32>
    %49 = arith.maximumf %47, %48 : vector<64x256xf32>
    %c0_42 = arith.constant 0 : index
    %c0_43 = arith.constant 0 : index
    %50 = vector.load %arg16[%c0_42, %c0_43] : memref<32x64xf32, #tpu.memory_space<vmem>>, vector<32x64xf32>
    %cst_44 = arith.constant dense<0.000000e+00> : vector<32x256xf32>
    %51 = tpu.matmul %50, %49, %cst_44 {dimension_numbers = #tpu.dot_dimension_numbers<[1], [0], [0], [1], [0, 0, 1, 1], [], []>} : vector<32x64xf32>, vector<64x256xf32>, vector<32x256xf32> -> vector<32x256xf32>
    %c0_45 = arith.constant 0 : index
    %c0_46 = arith.constant 0 : index
    %52 = vector.load %arg17[%c0_45, %c0_46] : memref<32x1xf32, #tpu.memory_space<vmem>>, vector<32x1xf32>
    %53 = vector.broadcast %52 : vector<32x1xf32> to vector<32x256xf32>
    %54 = arith.addf %51, %53 : vector<32x256xf32>
    %c0_47 = arith.constant 0 : index
    %c0_48 = arith.constant 0 : index
    %55 = vector.load %arg18[%c0_47, %c0_48] : memref<32x256xf32, #tpu.memory_space<vmem>>, vector<32x256xf32>
    tpu.vector_store %arg18[%c0_47, %c0_48], %54 {strides = array<i32>} : memref<32x256xf32, #tpu.memory_space<vmem>>, vector<32x256xf32>,
    return
  }
  func.func @transform_0(%arg0: i32) -> (i32, i32) {
    %c0_i32 = arith.constant 0 : i32
    %c0_i32_0 = arith.constant 0 : i32
    return %c0_i32, %arg0 : i32, i32
  }
  func.func @transform_1(%arg0: i32) -> (i32, i32) {
    %c0_i32 = arith.constant 0 : i32
    %c0_i32_0 = arith.constant 0 : i32
    %c0_i32_1 = arith.constant 0 : i32
    return %c0_i32, %c0_i32_0 : i32, i32
  }
  func.func @transform_2(%arg0: i32) -> (i32, i32) {
    %c0_i32 = arith.constant 0 : i32
    %c0_i32_0 = arith.constant 0 : i32
    %c0_i32_1 = arith.constant 0 : i32
    return %c0_i32, %c0_i32_0 : i32, i32
  }
  func.func @transform_3(%arg0: i32) -> (i32, i32) {
    %c0_i32 = arith.constant 0 : i32
    %c0_i32_0 = arith.constant 0 : i32
    %c0_i32_1 = arith.constant 0 : i32
    return %c0_i32, %c0_i32_0 : i32, i32
  }
  func.func @transform_4(%arg0: i32) -> (i32, i32) {
    %c0_i32 = arith.constant 0 : i32
    %c0_i32_0 = arith.constant 0 : i32
    %c0_i32_1 = arith.constant 0 : i32
    return %c0_i32, %c0_i32_0 : i32, i32
  }
  func.func @transform_5(%arg0: i32) -> (i32, i32) {
    %c0_i32 = arith.constant 0 : i32
    %c0_i32_0 = arith.constant 0 : i32
    %c0_i32_1 = arith.constant 0 : i32
    return %c0_i32, %c0_i32_0 : i32, i32
  }
  func.func @transform_6(%arg0: i32) -> (i32, i32) {
    %c0_i32 = arith.constant 0 : i32
    %c0_i32_0 = arith.constant 0 : i32
    %c0_i32_1 = arith.constant 0 : i32
    return %c0_i32, %c0_i32_0 : i32, i32
  }
  func.func @transform_7(%arg0: i32) -> (i32, i32) {
    %c0_i32 = arith.constant 0 : i32
    %c0_i32_0 = arith.constant 0 : i32
    %c0_i32_1 = arith.constant 0 : i32
    return %c0_i32, %c0_i32_0 : i32, i32
  }
  func.func @transform_8(%arg0: i32) -> (i32, i32) {
    %c0_i32 = arith.constant 0 : i32
    %c0_i32_0 = arith.constant 0 : i32
    %c0_i32_1 = arith.constant 0 : i32
    return %c0_i32, %c0_i32_0 : i32, i32
  }
  func.func @transform_9(%arg0: i32) -> (i32, i32) {
    %c0_i32 = arith.constant 0 : i32
    %c0_i32_0 = arith.constant 0 : i32
    %c0_i32_1 = arith.constant 0 : i32
    return %c0_i32, %c0_i32_0 : i32, i32
  }
  func.func @transform_10(%arg0: i32) -> (i32, i32) {
    %c0_i32 = arith.constant 0 : i32
    %c0_i32_0 = arith.constant 0 : i32
    %c0_i32_1 = arith.constant 0 : i32
    return %c0_i32, %c0_i32_0 : i32, i32
  }
  func.func @transform_11(%arg0: i32) -> (i32, i32) {
    %c0_i32 = arith.constant 0 : i32
    %c0_i32_0 = arith.constant 0 : i32
    %c0_i32_1 = arith.constant 0 : i32
    return %c0_i32, %c0_i32_0 : i32, i32
  }
  func.func @transform_12(%arg0: i32) -> (i32, i32) {
    %c0_i32 = arith.constant 0 : i32
    %c0_i32_0 = arith.constant 0 : i32
    %c0_i32_1 = arith.constant 0 : i32
    return %c0_i32, %c0_i32_0 : i32, i32
  }
  func.func @transform_13(%arg0: i32) -> (i32, i32) {
    %c0_i32 = arith.constant 0 : i32
    %c0_i32_0 = arith.constant 0 : i32
    %c0_i32_1 = arith.constant 0 : i32
    return %c0_i32, %c0_i32_0 : i32, i32
  }
  func.func @transform_14(%arg0: i32) -> (i32, i32) {
    %c0_i32 = arith.constant 0 : i32
    %c0_i32_0 = arith.constant 0 : i32
    %c0_i32_1 = arith.constant 0 : i32
    return %c0_i32, %c0_i32_0 : i32, i32
  }
  func.func @transform_15(%arg0: i32) -> (i32, i32) {
    %c0_i32 = arith.constant 0 : i32
    %c0_i32_0 = arith.constant 0 : i32
    %c0_i32_1 = arith.constant 0 : i32
    return %c0_i32, %c0_i32_0 : i32, i32
  }
  func.func @transform_16(%arg0: i32) -> (i32, i32) {
    %c0_i32 = arith.constant 0 : i32
    %c0_i32_0 = arith.constant 0 : i32
    %c0_i32_1 = arith.constant 0 : i32
    return %c0_i32, %c0_i32_0 : i32, i32
  }
  func.func @transform_17(%arg0: i32) -> (i32, i32) {
    %c0_i32 = arith.constant 0 : i32
    %c0_i32_0 = arith.constant 0 : i32
    return %c0_i32, %arg0 : i32, i32
  }
}

</mosaic_0001>

<llo_original>
// kernel: ae_forward.1
$region0: #{ae_forward.1}
  #allocation0 [shape = 'u32[]', space=smem, size = 0x4, offset = 0x4, fixed_abs, tag = 'smem constant byte address 0x4 - core index']
  #allocation1 [shape = 'u32[144,128]{1,0:T(1,128)}', space=vmem, size = 0x12000, scoped, tag = 'internal scratch']
  %s0 = inlined_call_operand.vmem [shape: f32[32,512], index: 0, kind: input, shape index: {}]
  %s1 = inlined_call_operand.vmem [shape: f32[64,32], index: 1, kind: input, shape index: {}]
  %s2 = inlined_call_operand.vmem [shape: f32[64,1], index: 2, kind: input, shape index: {}]
  %s3 = inlined_call_operand.vmem [shape: f32[32,64], index: 3, kind: input, shape index: {}]
  %s4 = inlined_call_operand.vmem [shape: f32[32,1], index: 4, kind: input, shape index: {}]
  %s5 = inlined_call_operand.vmem [shape: f32[16,32], index: 5, kind: input, shape index: {}]
  %s6 = inlined_call_operand.vmem [shape: f32[16,1], index: 6, kind: input, shape index: {}]
  %s7 = inlined_call_operand.vmem [shape: f32[8,16], index: 7, kind: input, shape index: {}]
  %s8 = inlined_call_operand.vmem [shape: f32[8,1], index: 8, kind: input, shape index: {}]
  %s9 = inlined_call_operand.vmem [shape: f32[16,8], index: 9, kind: input, shape index: {}]
  %s10 = inlined_call_operand.vmem [shape: f32[16,1], index: 10, kind: input, shape index: {}]
  %s11 = inlined_call_operand.vmem [shape: f32[32,16], index: 11, kind: input, shape index: {}]
  %s12 = inlined_call_operand.vmem [shape: f32[32,1], index: 12, kind: input, shape index: {}]
  %s13 = inlined_call_operand.vmem [shape: f32[64,32], index: 13, kind: input, shape index: {}]
  %s14 = inlined_call_operand.vmem [shape: f32[64,1], index: 14, kind: input, shape index: {}]
  %s15 = inlined_call_operand.vmem [shape: f32[32,64], index: 15, kind: input, shape index: {}]
  %s16 = inlined_call_operand.vmem [shape: f32[32,1], index: 16, kind: input, shape index: {}]
  %s17 = inlined_call_operand.hbm [shape: f32[32,512], index: 17, kind: output, shape index: {}]
  %s18 = sld [smem:[#allocation0]]
  $region124: #{ae_forward.1} parent=0
    _
  %s20 = ssub.s32 1, %s18
  %s21 = scalar_select 0, %s20, %s18
  $region1: #{ae_forward.1} parent=0
    #allocation2 [shape = 'u8[65536]{0}', space=vmem, size = 0x10000, scoped, tag = 'input window, operand 0']
    #allocation3 [shape = 'u8[65536]{0}', space=vmem, size = 0x10000, scoped, tag = 'output window, operand 0']
    #allocation4 [shape = 's32[2]{0}', space=sflag, size = 0x8, scoped, tag = 'scoped memory for ae_forward.1']
    %22 = vsyncpa [#allocation4], 0
    %s23 = scalar_lea.sflag [#allocation4], 1
    %24 = vsyncpa %s23, 0
    loop: start=0, step=1, limit=4
    $region2: #{ae_forward.1} parent=1 // loop_pre_header
      _
    $region3: #{ae_forward.1} parent=1 // loop_header
      %s26 = sphi 0, %s30
      %p27 = scmp.ge.s32.totalorder %s26, 4
      %s36 = sphi 0, %s38
      %s39 = sphi 0, %s36
      %s40 = sphi 0, %s39
      %s56 = sphi 0, %s40
      %s60 = sphi 0, %s60
      %s62 = sphi 0, %s60
      %s63 = sphi 0, %s62
      %s77 = sphi 0, %s63
      %s81 = sphi 0, %s81
      %s83 = sphi 0, %s81
      %s84 = sphi 0, %s83
      %s98 = sphi 0, %s84
      %s102 = sphi 0, %s102
      %s104 = sphi 0, %s102
      %s105 = sphi 0, %s104
      %s119 = sphi 0, %s105
      %s123 = sphi 0, %s123
      %s125 = sphi 0, %s123
      %s126 = sphi 0, %s125
      %s140 = sphi 0, %s126
      %s144 = sphi 0, %s144
      %s146 = sphi 0, %s144
      %s147 = sphi 0, %s146
      %s161 = sphi 0, %s147
      %s165 = sphi 0, %s165
      %s167 = sphi 0, %s165
      %s168 = sphi 0, %s167
      %s182 = sphi 0, %s168
      %s186 = sphi 0, %s186
      %s188 = sphi 0, %s186
      %s189 = sphi 0, %s188
      %s203 = sphi 0, %s189
      %s207 = sphi 0, %s207
      %s209 = sphi 0, %s207
      %s210 = sphi 0, %s209
      %s224 = sphi 0, %s210
      %s228 = sphi 0, %s228
      %s230 = sphi 0, %s228
      %s231 = sphi 0, %s230
      %s245 = sphi 0, %s231
      %s249 = sphi 0, %s249
      %s251 = sphi 0, %s249
      %s252 = sphi 0, %s251
      %s266 = sphi 0, %s252
      %s270 = sphi 0, %s270
      %s272 = sphi 0, %s270
      %s273 = sphi 0, %s272
      %s287 = sphi 0, %s273
      %s291 = sphi 0, %s291
      %s293 = sphi 0, %s291
      %s294 = sphi 0, %s293
      %s308 = sphi 0, %s294
      %s312 = sphi 0, %s312
      %s314 = sphi 0, %s312
      %s315 = sphi 0, %s314
      %s329 = sphi 0, %s315
      %s333 = sphi 0, %s333
      %s335 = sphi 0, %s333
      %s336 = sphi 0, %s335
      %s350 = sphi 0, %s336
      %s354 = sphi 0, %s354
      %s356 = sphi 0, %s354
      %s357 = sphi 0, %s356
      %s371 = sphi 0, %s357
      %s375 = sphi 0, %s375
      %s377 = sphi 0, %s375
      %s378 = sphi 0, %s377
      %s392 = sphi 0, %s378
      %s398 = sphi 0, %s400
      %s401 = sphi 0, %s398
      %s402 = sphi 0, %s401
      %s418 = sphi 0, %s402
    $region4: #{ae_forward.1} parent=1 // loop_header_branch
      %29 = sbr.rel (%p27) target = $region8
    $region5: #{ae_forward.1} parent=1 // loop_body
      %s31 = ssub.s32 %s26, 1
      %s32 = ssub.s32 %s26, 2
      %s33 = sadd.s32 %s26, 1
      %s34 = ssub.s32 %s26, %s33
      %p35 = scmp.eq.s32.totalorder %s34, 0
      %s37 = sadd.s32 %s36, 1
      %s38 = scalar_select %p35, %s36, %s37
      %p41 = pneg %p35
      %p42 = scmp.eq.s32.totalorder %s26, 1
      %p43 = por %p41, %p42
      %p44 = scmp.ne.s32.totalorder %s36, %s39
      %p45 = scmp.eq.s32.totalorder %s26, 0
      %p46 = por %p44, %p45
      %p47 = scmp.ne.s32.totalorder %s36, %s39
      %p48 = scmp.eq.s32.totalorder %s31, 1
      %p49 = por %p47, %p48
      %p50 = scmp.ne.s32.totalorder %s39, %s40
      %p51 = scmp.eq.s32.totalorder %s31, 0
      %p52 = por %p50, %p51
      %p53 = scmp.ne.s32.totalorder %s39, %s40
      %p54 = scmp.eq.s32.totalorder %s32, 1
      %p55 = por %p53, %p54
      %p57 = scmp.ne.s32.totalorder %s40, %s56
      %p58 = scmp.eq.s32.totalorder %s32, 0
      %p59 = por %p57, %p58
      %s61 = sadd.s32 %s60, 1
      %p64 = scmp.eq.s32.totalorder %s26, 1
      %p65 = scmp.ne.s32.totalorder %s60, %s62
      %p66 = scmp.eq.s32.totalorder %s26, 0
      %p67 = por %p65, %p66
      %p68 = scmp.ne.s32.totalorder %s60, %s62
      %p69 = scmp.eq.s32.totalorder %s31, 1
      %p70 = por %p68, %p69
      %p71 = scmp.ne.s32.totalorder %s62, %s63
      %p72 = scmp.eq.s32.totalorder %s31, 0
      %p73 = por %p71, %p72
      %p74 = scmp.ne.s32.totalorder %s62, %s63
      %p75 = scmp.eq.s32.totalorder %s32, 1
      %p76 = por %p74, %p75
      %p78 = scmp.ne.s32.totalorder %s63, %s77
      %p79 = scmp.eq.s32.totalorder %s32, 0
      %p80 = por %p78, %p79
      %s82 = sadd.s32 %s81, 1
      %p85 = scmp.eq.s32.totalorder %s26, 1
      %p86 = scmp.ne.s32.totalorder %s81, %s83
      %p87 = scmp.eq.s32.totalorder %s26, 0
      %p88 = por %p86, %p87
      %p89 = scmp.ne.s32.totalorder %s81, %s83
      %p90 = scmp.eq.s32.totalorder %s31, 1
      %p91 = por %p89, %p90
      %p92 = scmp.ne.s32.totalorder %s83, %s84
      %p93 = scmp.eq.s32.totalorder %s31, 0
      %p94 = por %p92, %p93
      %p95 = scmp.ne.s32.totalorder %s83, %s84
      %p96 = scmp.eq.s32.totalorder %s32, 1
      %p97 = por %p95, %p96
      %p99 = scmp.ne.s32.totalorder %s84, %s98
      %p100 = scmp.eq.s32.totalorder %s32, 0
      %p101 = por %p99, %p100
      %s103 = sadd.s32 %s102, 1
      %p106 = scmp.eq.s32.totalorder %s26, 1
      %p107 = scmp.ne.s32.totalorder %s102, %s104
      %p108 = scmp.eq.s32.totalorder %s26, 0
      %p109 = por %p107, %p108
      %p110 = scmp.ne.s32.totalorder %s102, %s104
      %p111 = scmp.eq.s32.totalorder %s31, 1
      %p112 = por %p110, %p111
      %p113 = scmp.ne.s32.totalorder %s104, %s105
      %p114 = scmp.eq.s32.totalorder %s31, 0
      %p115 = por %p113, %p114
      %p116 = scmp.ne.s32.totalorder %s104, %s105
      %p117 = scmp.eq.s32.totalorder %s32, 1
      %p118 = por %p116, %p117
      %p120 = scmp.ne.s32.totalorder %s105, %s119
      %p121 = scmp.eq.s32.totalorder %s32, 0
      %p122 = por %p120, %p121
      %s124 = sadd.s32 %s123, 1
      %p127 = scmp.eq.s32.totalorder %s26, 1
      %p128 = scmp.ne.s32.totalorder %s123, %s125
      %p129 = scmp.eq.s32.totalorder %s26, 0
      %p130 = por %p128, %p129
      %p131 = scmp.ne.s32.totalorder %s123, %s125
      %p132 = scmp.eq.s32.totalorder %s31, 1
      %p133 = por %p131, %p132
      %p134 = scmp.ne.s32.totalorder %s125, %s126
      %p135 = scmp.eq.s32.totalorder %s31, 0
      %p136 = por %p134, %p135
      %p137 = scmp.ne.s32.totalorder %s125, %s126
      %p138 = scmp.eq.s32.totalorder %s32, 1
      %p139 = por %p137, %p138
      %p141 = scmp.ne.s32.totalorder %s126, %s140
      %p142 = scmp.eq.s32.totalorder %s32, 0
      %p143 = por %p141, %p142
      %s145 = sadd.s32 %s144, 1
      %p148 = scmp.eq.s32.totalorder %s26, 1
      %p149 = scmp.ne.s32.totalorder %s144, %s146
      %p150 = scmp.eq.s32.totalorder %s26, 0
      %p151 = por %p149, %p150
      %p152 = scmp.ne.s32.totalorder %s144, %s146
      %p153 = scmp.eq.s32.totalorder %s31, 1
      %p154 = por %p152, %p153
      %p155 = scmp.ne.s32.totalorder %s146, %s147
      %p156 = scmp.eq.s32.totalorder %s31, 0
      %p157 = por %p155, %p156
      %p158 = scmp.ne.s32.totalorder %s146, %s147
      %p159 = scmp.eq.s32.totalorder %s32, 1
      %p160 = por %p158, %p159
      %p162 = scmp.ne.s32.totalorder %s147, %s161
      %p163 = scmp.eq.s32.totalorder %s32, 0
      %p164 = por %p162, %p163
      %s166 = sadd.s32 %s165, 1
      %p169 = scmp.eq.s32.totalorder %s26, 1
      %p170 = scmp.ne.s32.totalorder %s165, %s167
      %p171 = scmp.eq.s32.totalorder %s26, 0
      %p172 = por %p170, %p171
      %p173 = scmp.ne.s32.totalorder %s165, %s167
      %p174 = scmp.eq.s32.totalorder %s31, 1
      %p175 = por %p173, %p174
      %p176 = scmp.ne.s32.totalorder %s167, %s168
      %p177 = scmp.eq.s32.totalorder %s31, 0
      %p178 = por %p176, %p177
      %p179 = scmp.ne.s32.totalorder %s167, %s168
      %p180 = scmp.eq.s32.totalorder %s32, 1
      %p181 = por %p179, %p180
      %p183 = scmp.ne.s32.totalorder %s168, %s182
      %p184 = scmp.eq.s32.totalorder %s32, 0
      %p185 = por %p183, %p184
      %s187 = sadd.s32 %s186, 1
      %p190 = scmp.eq.s32.totalorder %s26, 1
      %p191 = scmp.ne.s32.totalorder %s186, %s188
      %p192 = scmp.eq.s32.totalorder %s26, 0
      %p193 = por %p191, %p192
      %p194 = scmp.ne.s32.totalorder %s186, %s188
      %p195 = scmp.eq.s32.totalorder %s31, 1
      %p196 = por %p194, %p195
      %p197 = scmp.ne.s32.totalorder %s188, %s189
      %p198 = scmp.eq.s32.totalorder %s31, 0
      %p199 = por %p197, %p198
      %p200 = scmp.ne.s32.totalorder %s188, %s189
      %p201 = scmp.eq.s32.totalorder %s32, 1
      %p202 = por %p200, %p201
      %p204 = scmp.ne.s32.totalorder %s189, %s203
      %p205 = scmp.eq.s32.totalorder %s32, 0
      %p206 = por %p204, %p205
      %s208 = sadd.s32 %s207, 1
      %p211 = scmp.eq.s32.totalorder %s26, 1
      %p212 = scmp.ne.s32.totalorder %s207, %s209
      %p213 = scmp.eq.s32.totalorder %s26, 0
      %p214 = por %p212, %p213
      %p215 = scmp.ne.s32.totalorder %s207, %s209
      %p216 = scmp.eq.s32.totalorder %s31, 1
      %p217 = por %p215, %p216
      %p218 = scmp.ne.s32.totalorder %s209, %s210
      %p219 = scmp.eq.s32.totalorder %s31, 0
      %p220 = por %p218, %p219
      %p221 = scmp.ne.s32.totalorder %s209, %s210
      %p222 = scmp.eq.s32.totalorder %s32, 1
      %p223 = por %p221, %p222
      %p225 = scmp.ne.s32.totalorder %s210, %s224
      %p226 = scmp.eq.s32.totalorder %s32, 0
      %p227 = por %p225, %p226
      %s229 = sadd.s32 %s228, 1
      %p232 = scmp.eq.s32.totalorder %s26, 1
      %p233 = scmp.ne.s32.totalorder %s228, %s230
      %p234 = scmp.eq.s32.totalorder %s26, 0
      %p235 = por %p233, %p234
      %p236 = scmp.ne.s32.totalorder %s228, %s230
      %p237 = scmp.eq.s32.totalorder %s31, 1
      %p238 = por %p236, %p237
      %p239 = scmp.ne.s32.totalorder %s230, %s231
      %p240 = scmp.eq.s32.totalorder %s31, 0
      %p241 = por %p239, %p240
      %p242 = scmp.ne.s32.totalorder %s230, %s231
      %p243 = scmp.eq.s32.totalorder %s32, 1
      %p244 = por %p242, %p243
      %p246 = scmp.ne.s32.totalorder %s231, %s245
      %p247 = scmp.eq.s32.totalorder %s32, 0
      %p248 = por %p246, %p247
      %s250 = sadd.s32 %s249, 1
      %p253 = scmp.eq.s32.totalorder %s26, 1
      %p254 = scmp.ne.s32.totalorder %s249, %s251
      %p255 = scmp.eq.s32.totalorder %s26, 0
      %p256 = por %p254, %p255
      %p257 = scmp.ne.s32.totalorder %s249, %s251
      %p258 = scmp.eq.s32.totalorder %s31, 1
      %p259 = por %p257, %p258
      %p260 = scmp.ne.s32.totalorder %s251, %s252
      %p261 = scmp.eq.s32.totalorder %s31, 0
      %p262 = por %p260, %p261
      %p263 = scmp.ne.s32.totalorder %s251, %s252
      %p264 = scmp.eq.s32.totalorder %s32, 1
      %p265 = por %p263, %p264
      %p267 = scmp.ne.s32.totalorder %s252, %s266
      %p268 = scmp.eq.s32.totalorder %s32, 0
      %p269 = por %p267, %p268
      %s271 = sadd.s32 %s270, 1
      %p274 = scmp.eq.s32.totalorder %s26, 1
      %p275 = scmp.ne.s32.totalorder %s270, %s272
      %p276 = scmp.eq.s32.totalorder %s26, 0
      %p277 = por %p275, %p276
      %p278 = scmp.ne.s32.totalorder %s270, %s272
      %p279 = scmp.eq.s32.totalorder %s31, 1
      %p280 = por %p278, %p279
      %p281 = scmp.ne.s32.totalorder %s272, %s273
      %p282 = scmp.eq.s32.totalorder %s31, 0
      %p283 = por %p281, %p282
      %p284 = scmp.ne.s32.totalorder %s272, %s273
      %p285 = scmp.eq.s32.totalorder %s32, 1
      %p286 = por %p284, %p285
      %p288 = scmp.ne.s32.totalorder %s273, %s287
      %p289 = scmp.eq.s32.totalorder %s32, 0
      %p290 = por %p288, %p289
      %s292 = sadd.s32 %s291, 1
      %p295 = scmp.eq.s32.totalorder %s26, 1
      %p296 = scmp.ne.s32.totalorder %s291, %s293
      %p297 = scmp.eq.s32.totalorder %s26, 0
      %p298 = por %p296, %p297
      %p299 = scmp.ne.s32.totalorder %s291, %s293
      %p300 = scmp.eq.s32.totalorder %s31, 1
      %p301 = por %p299, %p300
      %p302 = scmp.ne.s32.totalorder %s293, %s294
      %p303 = scmp.eq.s32.totalorder %s31, 0
      %p304 = por %p302, %p303
      %p305 = scmp.ne.s32.totalorder %s293, %s294
      %p306 = scmp.eq.s32.totalorder %s32, 1
      %p307 = por %p305, %p306
      %p309 = scmp.ne.s32.totalorder %s294, %s308
      %p310 = scmp.eq.s32.totalorder %s32, 0
      %p311 = por %p309, %p310
      %s313 = sadd.s32 %s312, 1
      %p316 = scmp.eq.s32.totalorder %s26, 1
      %p317 = scmp.ne.s32.totalorder %s312, %s314
      %p318 = scmp.eq.s32.totalorder %s26, 0
      %p319 = por %p317, %p318
      %p320 = scmp.ne.s32.totalorder %s312, %s314
      %p321 = scmp.eq.s32.totalorder %s31, 1
      %p322 = por %p320, %p321
      %p323 = scmp.ne.s32.totalorder %s314, %s315
      %p324 = scmp.eq.s32.totalorder %s31, 0
      %p325 = por %p323, %p324
      %p326 = scmp.ne.s32.totalorder %s314, %s315
      %p327 = scmp.eq.s32.totalorder %s32, 1
      %p328 = por %p326, %p327
      %p330 = scmp.ne.s32.totalorder %s315, %s329
      %p331 = scmp.eq.s32.totalorder %s32, 0
      %p332 = por %p330, %p331
      %s334 = sadd.s32 %s333, 1
      %p337 = scmp.eq.s32.totalorder %s26, 1
      %p338 = scmp.ne.s32.totalorder %s333, %s335
      %p339 = scmp.eq.s32.totalorder %s26, 0
      %p340 = por %p338, %p339
      %p341 = scmp.ne.s32.totalorder %s333, %s335
      %p342 = scmp.eq.s32.totalorder %s31, 1
      %p343 = por %p341, %p342
      %p344 = scmp.ne.s32.totalorder %s335, %s336
      %p345 = scmp.eq.s32.totalorder %s31, 0
      %p346 = por %p344, %p345
      %p347 = scmp.ne.s32.totalorder %s335, %s336
      %p348 = scmp.eq.s32.totalorder %s32, 1
      %p349 = por %p347, %p348
      %p351 = scmp.ne.s32.totalorder %s336, %s350
      %p352 = scmp.eq.s32.totalorder %s32, 0
      %p353 = por %p351, %p352
      %s355 = sadd.s32 %s354, 1
      %p358 = scmp.eq.s32.totalorder %s26, 1
      %p359 = scmp.ne.s32.totalorder %s354, %s356
      %p360 = scmp.eq.s32.totalorder %s26, 0
      %p361 = por %p359, %p360
      %p362 = scmp.ne.s32.totalorder %s354, %s356
      %p363 = scmp.eq.s32.totalorder %s31, 1
      %p364 = por %p362, %p363
      %p365 = scmp.ne.s32.totalorder %s356, %s357
      %p366 = scmp.eq.s32.totalorder %s31, 0
      %p367 = por %p365, %p366
      %p368 = scmp.ne.s32.totalorder %s356, %s357
      %p369 = scmp.eq.s32.totalorder %s32, 1
      %p370 = por %p368, %p369
      %p372 = scmp.ne.s32.totalorder %s357, %s371
      %p373 = scmp.eq.s32.totalorder %s32, 0
      %p374 = por %p372, %p373
      %s376 = sadd.s32 %s375, 1
      %p379 = scmp.eq.s32.totalorder %s26, 1
      %p380 = scmp.ne.s32.totalorder %s375, %s377
      %p381 = scmp.eq.s32.totalorder %s26, 0
      %p382 = por %p380, %p381
      %p383 = scmp.ne.s32.totalorder %s375, %s377
      %p384 = scmp.eq.s32.totalorder %s31, 1
      %p385 = por %p383, %p384
      %p386 = scmp.ne.s32.totalorder %s377, %s378
      %p387 = scmp.eq.s32.totalorder %s31, 0
      %p388 = por %p386, %p387
      %p389 = scmp.ne.s32.totalorder %s377, %s378
      %p390 = scmp.eq.s32.totalorder %s32, 1
      %p391 = por %p389, %p390
      %p393 = scmp.ne.s32.totalorder %s378, %s392
      %p394 = scmp.eq.s32.totalorder %s32, 0
      %p395 = por %p393, %p394
      %s396 = ssub.s32 %s26, %s33
      %p397 = scmp.eq.s32.totalorder %s396, 0
      %s399 = sadd.s32 %s398, 1
      %s400 = scalar_select %p397, %s398, %s399
      %p403 = pneg %p397
      %p404 = scmp.eq.s32.totalorder %s26, 1
      %p405 = por %p403, %p404
      %p406 = scmp.ne.s32.totalorder %s398, %s401
      %p407 = scmp.eq.s32.totalorder %s26, 0
      %p408 = por %p406, %p407
      %p409 = scmp.ne.s32.totalorder %s398, %s401
      %p410 = scmp.eq.s32.totalorder %s31, 1
      %p411 = por %p409, %p410
      %p412 = scmp.ne.s32.totalorder %s401, %s402
      %p413 = scmp.eq.s32.totalorder %s31, 0
      %p414 = por %p412, %p413
      %p415 = scmp.ne.s32.totalorder %s401, %s402
      %p416 = scmp.eq.s32.totalorder %s32, 1
      %p417 = por %p415, %p416
      %p419 = scmp.ne.s32.totalorder %s402, %s418
      %p420 = scmp.eq.s32.totalorder %s32, 0
      %p421 = por %p419, %p420
      %p422 = scmp.le.s32.totalorder 1, %s26
      %p423 = scmp.lt.s32.totalorder %s26, 3
      %p424 = pnand %p422, %p423
      %p425 = pneg %p424
      // Predicated region
      $region9: #{ae_forward.1} parent=5 // pred_check
        _
      $region10: #{ae_forward.1} parent=5 // pred_check_branch
        %427 = sbr.rel (%p424) target = $region12
      $region11: #{ae_forward.1} parent=5 // pred_region
        %s428 = ssub.s32 %s26, 1
        // Predicated region
        $region13: #{ae_forward.1} parent=11 // pred_check
          %p429 = pneg %p73
        $region14: #{ae_forward.1} parent=11 // pred_check_branch
          %431 = sbr.rel (%p429) target = $region16
        $region15: #{ae_forward.1} parent=11 // pred_region
          _
        $region16: #{ae_forward.1} parent=11 // pred_fallthru
          _
        // Predicated region
        $region17: #{ae_forward.1} parent=11 // pred_check
          %p432 = pneg %p94
        $region18: #{ae_forward.1} parent=11 // pred_check_branch
          %434 = sbr.rel (%p432) target = $region20
        $region19: #{ae_forward.1} parent=11 // pred_region
          _
        $region20: #{ae_forward.1} parent=11 // pred_fallthru
          _
        // Predicated region
        $region21: #{ae_forward.1} parent=11 // pred_check
          %p435 = pneg %p115
        $region22: #{ae_forward.1} parent=11 // pred_check_branch
          %437 = sbr.rel (%p435) target = $region24
        $region23: #{ae_forward.1} parent=11 // pred_region
          _
        $region24: #{ae_forward.1} parent=11 // pred_fallthru
          _
        // Predicated region
        $region25: #{ae_forward.1} parent=11 // pred_check
          %p438 = pneg %p136
        $region26: #{ae_forward.1} parent=11 // pred_check_branch
          %440 = sbr.rel (%p438) target = $region28
        $region27: #{ae_forward.1} parent=11 // pred_region
          _
        $region28: #{ae_forward.1} parent=11 // pred_fallthru
          _
        // Predicated region
        $region29: #{ae_forward.1} parent=11 // pred_check
          %p441 = pneg %p157
        $region30: #{ae_forward.1} parent=11 // pred_check_branch
          %443 = sbr.rel (%p441) target = $region32
        $region31: #{ae_forward.1} parent=11 // pred_region
          _
        $region32: #{ae_forward.1} parent=11 // pred_fallthru
          _
        // Predicated region
        $region33: #{ae_forward.1} parent=11 // pred_check
          %p444 = pneg %p178
        $region34: #{ae_forward.1} parent=11 // pred_check_branch
          %446 = sbr.rel (%p444) target = $region36
        $region35: #{ae_forward.1} parent=11 // pred_region
          _
        $region36: #{ae_forward.1} parent=11 // pred_fallthru
          _
        // Predicated region
        $region37: #{ae_forward.1} parent=11 // pred_check
          %p447 = pneg %p199
        $region38: #{ae_forward.1} parent=11 // pred_check_branch
          %449 = sbr.rel (%p447) target = $region40
        $region39: #{ae_forward.1} parent=11 // pred_region
          _
        $region40: #{ae_forward.1} parent=11 // pred_fallthru
          _
        // Predicated region
        $region41: #{ae_forward.1} parent=11 // pred_check
          %p450 = pneg %p220
        $region42: #{ae_forward.1} parent=11 // pred_check_branch
          %452 = sbr.rel (%p450) target = $region44
        $region43: #{ae_forward.1} parent=11 // pred_region
          _
        $region44: #{ae_forward.1} parent=11 // pred_fallthru
          _
        // Predicated region
        $region45: #{ae_forward.1} parent=11 // pred_check
          %p453 = pneg %p241
        $region46: #{ae_forward.1} parent=11 // pred_check_branch
          %455 = sbr.rel (%p453) target = $region48
        $region47: #{ae_forward.1} parent=11 // pred_region
          _
        $region48: #{ae_forward.1} parent=11 // pred_fallthru
          _
        // Predicated region
        $region49: #{ae_forward.1} parent=11 // pred_check
          %p456 = pneg %p262
        $region50: #{ae_forward.1} parent=11 // pred_check_branch
          %458 = sbr.rel (%p456) target = $region52
        $region51: #{ae_forward.1} parent=11 // pred_region
          _
        $region52: #{ae_forward.1} parent=11 // pred_fallthru
          _
        // Predicated region
        $region53: #{ae_forward.1} parent=11 // pred_check
          %p459 = pneg %p283
        $region54: #{ae_forward.1} parent=11 // pred_check_branch
          %461 = sbr.rel (%p459) target = $region56
        $region55: #{ae_forward.1} parent=11 // pred_region
          _
        $region56: #{ae_forward.1} parent=11 // pred_fallthru
          _
        // Predicated region
        $region57: #{ae_forward.1} parent=11 // pred_check
          %p462 = pneg %p304
        $region58: #{ae_forward.1} parent=11 // pred_check_branch
          %464 = sbr.rel (%p462) target = $region60
        $region59: #{ae_forward.1} parent=11 // pred_region
          _
        $region60: #{ae_forward.1} parent=11 // pred_fallthru
          _
        // Predicated region
        $region61: #{ae_forward.1} parent=11 // pred_check
          %p465 = pneg %p325
        $region62: #{ae_forward.1} parent=11 // pred_check_branch
          %467 = sbr.rel (%p465) target = $region64
        $region63: #{ae_forward.1} parent=11 // pred_region
          _
        $region64: #{ae_forward.1} parent=11 // pred_fallthru
          _
        // Predicated region
        $region65: #{ae_forward.1} parent=11 // pred_check
          %p468 = pneg %p346
        $region66: #{ae_forward.1} parent=11 // pred_check_branch
          %470 = sbr.rel (%p468) target = $region68
        $region67: #{ae_forward.1} parent=11 // pred_region
          _
        $region68: #{ae_forward.1} parent=11 // pred_fallthru
          _
        // Predicated region
        $region69: #{ae_forward.1} parent=11 // pred_check
          %p471 = pneg %p367
        $region70: #{ae_forward.1} parent=11 // pred_check_branch
          %473 = sbr.rel (%p471) target = $region72
        $region71: #{ae_forward.1} parent=11 // pred_region
          _
        $region72: #{ae_forward.1} parent=11 // pred_fallthru
          _
        // Predicated region
        $region73: #{ae_forward.1} parent=11 // pred_check
          %p474 = pneg %p388
        $region74: #{ae_forward.1} parent=11 // pred_check_branch
          %476 = sbr.rel (%p474) target = $region76
        $region75: #{ae_forward.1} parent=11 // pred_region
          _
        $region76: #{ae_forward.1} parent=11 // pred_fallthru
          _
      $region12: #{ae_forward.1} parent=5 // pred_fallthru
        _
      %p477 = scmp.lt.s32.totalorder %s26, 2
      // Predicated region
      $region77: #{ae_forward.1} parent=5 // pred_check
        %p478 = pneg %p477
      $region78: #{ae_forward.1} parent=5 // pred_check_branch
        %480 = sbr.rel (%p478) target = $region80
      $region79: #{ae_forward.1} parent=5 // pred_region
        // Predicated region
        $region81: #{ae_forward.1} parent=79 // pred_check
          %p481 = pneg %p46
        $region82: #{ae_forward.1} parent=79 // pred_check_branch
          %483 = sbr.rel (%p481) target = $region84
        $region83: #{ae_forward.1} parent=79 // pred_region
          %s484 = sand.u32 %s36, 1
          %s485 = sand.u32 %s36, 1
          %s486 = smul.addr %s485, 64
          %s487 = scalar_lea.vmem [#allocation2], %s486
          %s488 = smul.u32 2, %s26
          %s489 = smul.addr %s488, 8
          %s490 = scalar_lea.vmem %s0, %s489
          // Predicated region
          $region85: #{ae_forward.1} parent=83 // pred_check
            _
          $region86: #{ae_forward.1} parent=83 // pred_check_branch
            %492 = sbr.rel (0) target = $region88
          $region87: #{ae_forward.1} parent=83 // pred_region
            // Predicated region
            $region89: #{ae_forward.1} parent=87 // pred_check
              _
            $region90: #{ae_forward.1} parent=87 // pred_check_branch
              %494 = sbr.rel (0) target = $region92
            $region91: #{ae_forward.1} parent=87 // pred_region
              loop: start=0, step=1, limit=1
              $region93: #{ae_forward.1} parent=91 // loop_pre_header
                _
              $region94: #{ae_forward.1} parent=91 // loop_header
                %s496 = sphi 0, %s500
                %p497 = scmp.ge.s32.totalorder %s496, 1
                %s501 = sphi %s490, %s490
                %s502 = sphi %s487, %s487
              $region95: #{ae_forward.1} parent=91 // loop_header_branch
                %499 = sbr.rel (%p497) target = $region99
              $region96: #{ae_forward.1} parent=91 // loop_body
                %v503 = vld [vmem:[%s501] sm:$0xff]
                %504 = vst [vmem:[%s502] sm:$0xff] %v503
                %v505 = vld [vmem:[%s501 + $0x8] sm:$0xff]
                %506 = vst [vmem:[%s502 + $0x8] sm:$0xff] %v505
                %v507 = vld [vmem:[%s501 + $0x20] sm:$0xff]
                %508 = vst [vmem:[%s502 + $0x10] sm:$0xff] %v507
                %v509 = vld [vmem:[%s501 + $0x28] sm:$0xff]
                %510 = vst [vmem:[%s502 + $0x18] sm:$0xff] %v509
                %v511 = vld [vmem:[%s501 + $0x40] sm:$0xff]
                %512 = vst [vmem:[%s502 + $0x20] sm:$0xff] %v511
                %v513 = vld [vmem:[%s501 + $0x48] sm:$0xff]
                %514 = vst [vmem:[%s502 + $0x28] sm:$0xff] %v513
                %v515 = vld [vmem:[%s501 + $0x60] sm:$0xff]
                %516 = vst [vmem:[%s502 + $0x30] sm:$0xff] %v515
                %v517 = vld [vmem:[%s501 + $0x68] sm:$0xff]
                %518 = vst [vmem:[%s502 + $0x38] sm:$0xff] %v517
              $region97: #{ae_forward.1} parent=91 // loop_footer
                %s500 = sadd.s32 1, %s496
              $region98: #{ae_forward.1} parent=91 // loop_footer_branch
                %495 = sbr.rel target = $region94
              $region99: #{ae_forward.1} parent=91 // loop_exit
                _
            $region92: #{ae_forward.1} parent=87 // pred_fallthru
              _
            // Predicated region
            $region100: #{ae_forward.1} parent=87 // pred_check
              _
            $region101: #{ae_forward.1} parent=87 // pred_check_branch
              %520 = sbr.rel target = $region103
            $region102: #{ae_forward.1} parent=87 // pred_region
              _
            $region103: #{ae_forward.1} parent=87 // pred_fallthru
              _
          $region88: #{ae_forward.1} parent=83 // pred_fallthru
            _
          %521 = vnop
        $region84: #{ae_forward.1} parent=79 // pred_fallthru
          _
      $region80: #{ae_forward.1} parent=5 // pred_fallthru
        _
      %p522 = scmp.le.s32.totalorder 1, %s26
      %p523 = scmp.lt.s32.totalorder %s26, 3
      %p524 = pnand %p522, %p523
      %p525 = pneg %p524
      // Predicated region
      $region104: #{ae_forward.1} parent=5 // pred_check
        _
      $region105: #{ae_forward.1} parent=5 // pred_check_branch
        %527 = sbr.rel (%p524) target = $region107
      $region106: #{ae_forward.1} parent=5 // pred_region
        %s528 = ssub.s32 %s26, 1
        %s529 = sand.u32 %s39, 1
        %s530 = sand.u32 %s39, 1
        %s531 = smul.addr %s530, 64
        %s532 = scalar_lea.vmem [#allocation2], %s531
        // Predicated region
        $region108: #{ae_forward.1} parent=106 // pred_check
          %p533 = pneg %p52
        $region109: #{ae_forward.1} parent=106 // pred_check_branch
          %535 = sbr.rel (%p533) target = $region111
        $region110: #{ae_forward.1} parent=106 // pred_region
          _
        $region111: #{ae_forward.1} parent=106 // pred_fallthru
          _
        %s536 = sand.u32 %s39, 1
        %s537 = sand.u32 %s39, 1
        %s538 = smul.addr %s537, 64
        %s539 = scalar_lea.vmem [#allocation2], %s538
        %p540 = pneg %p52
        %p541 = pneg %p49
        %p542 = pneg %p73
        %p543 = pneg %p70
        %p544 = pneg %p94
        %p545 = pneg %p91
        %p546 = pneg %p115
        %p547 = pneg %p112
        %p548 = pneg %p136
        %p549 = pneg %p133
        %p550 = pneg %p157
        %p551 = pneg %p154
        %p552 = pneg %p178
        %p553 = pneg %p175
        %p554 = pneg %p199
        %p555 = pneg %p196
        %p556 = pneg %p220
        %p557 = pneg %p217
        %p558 = pneg %p241
        %p559 = pneg %p238
        %p560 = pneg %p262
        %p561 = pneg %p259
        %p562 = pneg %p283
        %p563 = pneg %p280
        %p564 = pneg %p304
        %p565 = pneg %p301
        %p566 = pneg %p325
        %p567 = pneg %p322
        %p568 = pneg %p346
        %p569 = pneg %p343
        %p570 = pneg %p367
        %p571 = pneg %p364
        %p572 = pneg %p388
        %p573 = pneg %p385
        %p574 = pneg %p414
        %p575 = pneg %p411
        %s576 = sand.u32 %s401, 1
        %s577 = scalar_lea.sflag [#allocation4], %s576
        %s578 = sand.u32 %s401, 1
        %s579 = smul.addr %s578, 64
        %s580 = scalar_lea.vmem [#allocation3], %s579
        %s581 = smul.u32 2, %s31
        %s582 = smul.u32 2, %s31
        %v583 = vld [vmem:[%s532] sm:$0xff]
        %v584 = vld [vmem:[%s532 + $0x8] sm:$0xff]
        %v585 = vld [vmem:[%s532 + $0x10] sm:$0xff]
        %v586 = vld [vmem:[%s532 + $0x18] sm:$0xff]
        %v587 = vld [vmem:[%s532 + $0x20] sm:$0xff]
        %v588 = vld [vmem:[%s532 + $0x28] sm:$0xff]
        %v589 = vld [vmem:[%s532 + $0x30] sm:$0xff]
        %v590 = vld [vmem:[%s532 + $0x38] sm:$0xff]
        %v591 = vld [vmem:[%s1] sm:$0xff]
        %v592 = vld [vmem:[%s1 + $0x8] sm:$0xff]
        %v593 = vld [vmem:[%s1 + $0x10] sm:$0xff]
        %v594 = vld [vmem:[%s1 + $0x18] sm:$0xff]
        %v595 = vld [vmem:[%s1 + $0x20] sm:$0xff]
        %v596 = vld [vmem:[%s1 + $0x28] sm:$0xff]
        %v597 = vld [vmem:[%s1 + $0x30] sm:$0xff]
        %v598 = vld [vmem:[%s1 + $0x38] sm:$0xff]
        %v599 = vld [vmem:[%s2] sm:$0xff]
        %v600 = vld [vmem:[%s2 + $0x8] sm:$0xff]
        %v601 = vld [vmem:[%s2 + $0x10] sm:$0xff]
        %v602 = vld [vmem:[%s2 + $0x18] sm:$0xff]
        %v603 = vld [vmem:[%s2 + $0x20] sm:$0xff]
        %v604 = vld [vmem:[%s2 + $0x28] sm:$0xff]
        %v605 = vld [vmem:[%s2 + $0x30] sm:$0xff]
        %v606 = vld [vmem:[%s2 + $0x38] sm:$0xff]
        %608 = vset.pattern.permute.xlu0 0
        %609 = vperm.xlu0 %608, %v599
        %v610 = vpop.permute.xlu0 %609
        %613 = vset.pattern.permute.xlu0 0
        %614 = vperm.xlu0 %613, %v600
        %v615 = vpop.permute.xlu0 %614
        %618 = vset.pattern.permute.xlu0 0
        %619 = vperm.xlu0 %618, %v601
        %v620 = vpop.permute.xlu0 %619
        %623 = vset.pattern.permute.xlu0 0
        %624 = vperm.xlu0 %623, %v602
        %v625 = vpop.permute.xlu0 %624
        %628 = vset.pattern.permute.xlu0 0
        %629 = vperm.xlu0 %628, %v603
        %v630 = vpop.permute.xlu0 %629
        %633 = vset.pattern.permute.xlu0 0
        %634 = vperm.xlu0 %633, %v604
        %v635 = vpop.permute.xlu0 %634
        %638 = vset.pattern.permute.xlu0 0
        %639 = vperm.xlu0 %638, %v605
        %v640 = vpop.permute.xlu0 %639
        %643 = vset.pattern.permute.xlu0 0
        %644 = vperm.xlu0 %643, %v606
        %v645 = vpop.permute.xlu0 %644
        %vm647 = vcmask 261120
        %v649 = vsel %vm647, %v591, 0
        %v652 = vsel %vm647, %v592, 0
        %v655 = vsel %vm647, %v593, 0
        %v658 = vsel %vm647, %v594, 0
        %v661 = vsel %vm647, %v595, 0
        %v664 = vsel %vm647, %v596, 0
        %v667 = vsel %vm647, %v597, 0
        %v670 = vsel %vm647, %v598, 0
        %672 = vmatprep.subr.mxu0 0.0
        %673 = vmatpush1.msra.mxu0 0.0
        %674 = vmatprep.subr.mxu0 0.0
        %675 = vmatpush1.msra.mxu0 0.0
        %676 = vmatprep.subr.mxu0 0.0
        %677 = vmatpush1.msra.mxu0 0.0
        %678 = vmatprep.subr.mxu0 0.0
        %679 = vmatpush1.msra.mxu0 0.0
        %680 = vmatprep.subr.mxu0 0.0
        %681 = vmatpush1.msra.mxu0 0.0
        %682 = vmatprep.subr.mxu0 0.0
        %683 = vmatpush1.msra.mxu0 0.0
        %684 = vmatprep.subr.mxu0 0.0
        %685 = vmatpush1.msra.mxu0 0.0
        %686 = vmatprep.subr.mxu0 0.0
        %687 = vmatpush1.msra.mxu0 0.0
        %688 = vmatprep.subr.mxu0 0.0
        %689 = vmatpush1.msra.mxu0 0.0
        %690 = vmatprep.subr.mxu0 0.0
        %691 = vmatpush1.msra.mxu0 0.0
        %692 = vmatprep.subr.mxu0 0.0
        %693 = vmatpush1.msra.mxu0 0.0
        %694 = vmatprep.subr.mxu0 0.0
        %695 = vmatpush1.msra.mxu0 0.0
        %696 = vmatprep.subr.mxu0 %v590
        %697 = vmatpush1.msra.mxu0 %v589
        %698 = vmatprep.subr.mxu0 %v588
        %699 = vmatpush1.msra.mxu0 %v587
        %700 = vmatprep.subr.mxu0 %v586
        %701 = vmatpush1.msra.mxu0 %v585
        %702 = vmatprep.subr.mxu0 %v584
        %703 = vmatpush1.msra.mxu0 %v583
        %704 = vmatprep.subr.mxu0 0.0
        %705 = vmatpush2.msra.mxu0 0.0
        %706 = vmatprep.subr.mxu0 0.0
        %707 = vmatpush2.msra.mxu0 0.0
        %708 = vmatprep.subr.mxu0 0.0
        %709 = vmatpush2.msra.mxu0 0.0
        %710 = vmatprep.subr.mxu0 0.0
        %711 = vmatpush2.msra.mxu0 0.0
        %712 = vmatprep.subr.mxu0 0.0
        %713 = vmatpush2.msra.mxu0 0.0
        %714 = vmatprep.subr.mxu0 0.0
        %715 = vmatpush2.msra.mxu0 0.0
        %716 = vmatprep.subr.mxu0 0.0
        %717 = vmatpush2.msra.mxu0 0.0
        %718 = vmatprep.subr.mxu0 0.0
        %719 = vmatpush2.msra.mxu0 0.0
        %720 = vmatprep.subr.mxu0 0.0
        %721 = vmatpush2.msra.mxu0 0.0
        %722 = vmatprep.subr.mxu0 0.0
        %723 = vmatpush2.msra.mxu0 0.0
        %724 = vmatprep.subr.mxu0 0.0
        %725 = vmatpush2.msra.mxu0 0.0
        %726 = vmatprep.subr.mxu0 0.0
        %727 = vmatpush2.msra.mxu0 0.0
        %728 = vmatprep.subr.mxu0 0.0
        %729 = vmatpush2.msra.mxu0 0.0
        %730 = vmatprep.subr.mxu0 0.0
        %731 = vmatpush2.msra.mxu0 0.0
        %732 = vmatprep.subr.mxu0 0.0
        %733 = vmatpush2.msra.mxu0 0.0
        %734 = vmatprep.subr.mxu0 0.0
        %735 = vmatpush2.msra.mxu0 0.0
        %736 = vmatprep.mubr.f32.mxu0 0.0
        %737 = vmatmul.mubr.f32.gmra.mxu0 %v649
        %v738 = vpop.f32.mrf.mxu0
        %v739 = vadd.f32 %v610, %v738
        %v740 = vpop.f32.mrf.mxu0
        %v741 = vadd.f32 %v610, %v740
        %742 = vmatprep.mubr.f32.mxu0 0.0
        %743 = vmatmul.mubr.f32.gmra.mxu0 %v652
        %v744 = vpop.f32.mrf.mxu0
        %v745 = vadd.f32 %v615, %v744
        %v746 = vpop.f32.mrf.mxu0
        %v747 = vadd.f32 %v615, %v746
        %748 = vmatprep.mubr.f32.mxu0 0.0
        %749 = vmatmul.mubr.f32.gmra.mxu0 %v655
        %v750 = vpop.f32.mrf.mxu0
        %v751 = vadd.f32 %v620, %v750
        %v752 = vpop.f32.mrf.mxu0
        %v753 = vadd.f32 %v620, %v752
        %754 = vmatprep.mubr.f32.mxu0 0.0
        %755 = vmatmul.mubr.f32.gmra.mxu0 %v658
        %v756 = vpop.f32.mrf.mxu0
        %v757 = vadd.f32 %v625, %v756
        %v758 = vpop.f32.mrf.mxu0
        %v759 = vadd.f32 %v625, %v758
        %760 = vmatprep.mubr.f32.mxu0 0.0
        %761 = vmatmul.mubr.f32.gmra.mxu0 %v661
        %v762 = vpop.f32.mrf.mxu0
        %v763 = vadd.f32 %v630, %v762
        %v764 = vpop.f32.mrf.mxu0
        %v765 = vadd.f32 %v630, %v764
        %766 = vmatprep.mubr.f32.mxu0 0.0
        %767 = vmatmul.mubr.f32.gmra.mxu0 %v664
        %v768 = vpop.f32.mrf.mxu0
        %v769 = vadd.f32 %v635, %v768
        %v770 = vpop.f32.mrf.mxu0
        %v771 = vadd.f32 %v635, %v770
        %772 = vmatprep.mubr.f32.mxu0 0.0
        %773 = vmatmul.mubr.f32.gmra.mxu0 %v667
        %v774 = vpop.f32.mrf.mxu0
        %v775 = vadd.f32 %v640, %v774
        %v776 = vpop.f32.mrf.mxu0
        %v777 = vadd.f32 %v640, %v776
        %778 = vmatprep.mubr.f32.mxu0 0.0
        %779 = vmatmul.mubr.f32.gmra.mxu0 %v670
        %v780 = vpop.f32.mrf.mxu0
        %v781 = vadd.f32 %v645, %v780
        %v782 = vpop.f32.mrf.mxu0
        %v783 = vadd.f32 %v645, %v782
        %784 = vdwg.mxu0
        %v785 = vmax.f32 %v739, 0.0
        %v786 = vmax.f32 %v741, 0.0
        %v787 = vmax.f32 %v745, 0.0
        %v788 = vmax.f32 %v747, 0.0
        %v789 = vmax.f32 %v751, 0.0
        %v790 = vmax.f32 %v753, 0.0
        %v791 = vmax.f32 %v757, 0.0
        %v792 = vmax.f32 %v759, 0.0
        %v793 = vmax.f32 %v763, 0.0
        %v794 = vmax.f32 %v765, 0.0
        %v795 = vmax.f32 %v769, 0.0
        %v796 = vmax.f32 %v771, 0.0
        %v797 = vmax.f32 %v775, 0.0
        %v798 = vmax.f32 %v777, 0.0
        %v799 = vmax.f32 %v781, 0.0
        %v800 = vmax.f32 %v783, 0.0
        %v801 = vld [vmem:[%s3] sm:$0xff]
        %v802 = vld [vmem:[%s3 + $0x8] sm:$0xff]
        %v803 = vld [vmem:[%s3 + $0x10] sm:$0xff]
        %v804 = vld [vmem:[%s3 + $0x18] sm:$0xff]
        %v805 = vld [vmem:[%s4] sm:$0xff]
        %v806 = vld [vmem:[%s4 + $0x8] sm:$0xff]
        %v807 = vld [vmem:[%s4 + $0x10] sm:$0xff]
        %v808 = vld [vmem:[%s4 + $0x18] sm:$0xff]
        %810 = vset.pattern.permute.xlu0 0
        %811 = vperm.xlu0 %810, %v805
        %v812 = vpop.permute.xlu0 %811
        %815 = vset.pattern.permute.xlu0 0
        %816 = vperm.xlu0 %815, %v806
        %v817 = vpop.permute.xlu0 %816
        %820 = vset.pattern.permute.xlu0 0
        %821 = vperm.xlu0 %820, %v807
        %v822 = vpop.permute.xlu0 %821
        %825 = vset.pattern.permute.xlu0 0
        %826 = vperm.xlu0 %825, %v808
        %v827 = vpop.permute.xlu0 %826
        %vm829 = vcmask 523264
        %v831 = vsel %vm829, %v801, 0
        %v834 = vsel %vm829, %v802, 0
        %v837 = vsel %vm829, %v803, 0
        %v840 = vsel %vm829, %v804, 0
        %842 = vmatprep.subr.mxu0 0.0
        %843 = vmatpush1.msra.mxu0 0.0
        %844 = vmatprep.subr.mxu0 0.0
        %845 = vmatpush1.msra.mxu0 0.0
        %846 = vmatprep.subr.mxu0 0.0
        %847 = vmatpush1.msra.mxu0 0.0
        %848 = vmatprep.subr.mxu0 0.0
        %849 = vmatpush1.msra.mxu0 0.0
        %850 = vmatprep.subr.mxu0 0.0
        %851 = vmatpush1.msra.mxu0 0.0
        %852 = vmatprep.subr.mxu0 0.0
        %853 = vmatpush1.msra.mxu0 0.0
        %854 = vmatprep.subr.mxu0 0.0
        %855 = vmatpush1.msra.mxu0 0.0
        %856 = vmatprep.subr.mxu0 0.0
        %857 = vmatpush1.msra.mxu0 0.0
        %858 = vmatprep.subr.mxu0 %v800
        %859 = vmatpush1.msra.mxu0 %v799
        %860 = vmatprep.subr.mxu0 %v798
        %861 = vmatpush1.msra.mxu0 %v797
        %862 = vmatprep.subr.mxu0 %v796
        %863 = vmatpush1.msra.mxu0 %v795
        %864 = vmatprep.subr.mxu0 %v794
        %865 = vmatpush1.msra.mxu0 %v793
        %866 = vmatprep.subr.mxu0 %v792
        %867 = vmatpush1.msra.mxu0 %v791
        %868 = vmatprep.subr.mxu0 %v790
        %869 = vmatpush1.msra.mxu0 %v789
        %870 = vmatprep.subr.mxu0 %v788
        %871 = vmatpush1.msra.mxu0 %v787
        %872 = vmatprep.subr.mxu0 %v786
        %873 = vmatpush1.msra.mxu0 %v785
        %874 = vmatprep.subr.mxu0 0.0
        %875 = vmatpush2.msra.mxu0 0.0
        %876 = vmatprep.subr.mxu0 0.0
        %877 = vmatpush2.msra.mxu0 0.0
        %878 = vmatprep.subr.mxu0 0.0
        %879 = vmatpush2.msra.mxu0 0.0
        %880 = vmatprep.subr.mxu0 0.0
        %881 = vmatpush2.msra.mxu0 0.0
        %882 = vmatprep.subr.mxu0 0.0
        %883 = vmatpush2.msra.mxu0 0.0
        %884 = vmatprep.subr.mxu0 0.0
        %885 = vmatpush2.msra.mxu0 0.0
        %886 = vmatprep.subr.mxu0 0.0
        %887 = vmatpush2.msra.mxu0 0.0
        %888 = vmatprep.subr.mxu0 0.0
        %889 = vmatpush2.msra.mxu0 0.0
        %890 = vmatprep.subr.mxu0 0.0
        %891 = vmatpush2.msra.mxu0 0.0
        %892 = vmatprep.subr.mxu0 0.0
        %893 = vmatpush2.msra.mxu0 0.0
        %894 = vmatprep.subr.mxu0 0.0
        %895 = vmatpush2.msra.mxu0 0.0
        %896 = vmatprep.subr.mxu0 0.0
        %897 = vmatpush2.msra.mxu0 0.0
        %898 = vmatprep.subr.mxu0 0.0
        %899 = vmatpush2.msra.mxu0 0.0
        %900 = vmatprep.subr.mxu0 0.0
        %901 = vmatpush2.msra.mxu0 0.0
        %902 = vmatprep.subr.mxu0 0.0
        %903 = vmatpush2.msra.mxu0 0.0
        %904 = vmatprep.subr.mxu0 0.0
        %905 = vmatpush2.msra.mxu0 0.0
        %906 = vmatprep.mubr.f32.mxu0 0.0
        %907 = vmatmul.mubr.f32.gmra.mxu0 %v831
        %v908 = vpop.f32.mrf.mxu0
        %v909 = vadd.f32 %v812, %v908
        %v910 = vpop.f32.mrf.mxu0
        %v911 = vadd.f32 %v812, %v910
        %912 = vmatprep.mubr.f32.mxu0 0.0
        %913 = vmatmul.mubr.f32.gmra.mxu0 %v834
        %v914 = vpop.f32.mrf.mxu0
        %v915 = vadd.f32 %v817, %v914
        %v916 = vpop.f32.mrf.mxu0
        %v917 = vadd.f32 %v817, %v916
        %918 = vmatprep.mubr.f32.mxu0 0.0
        %919 = vmatmul.mubr.f32.gmra.mxu0 %v837
        %v920 = vpop.f32.mrf.mxu0
        %v921 = vadd.f32 %v822, %v920
        %v922 = vpop.f32.mrf.mxu0
        %v923 = vadd.f32 %v822, %v922
        %924 = vmatprep.mubr.f32.mxu0 0.0
        %925 = vmatmul.mubr.f32.gmra.mxu0 %v840
        %v926 = vpop.f32.mrf.mxu0
        %v927 = vadd.f32 %v827, %v926
        %v928 = vpop.f32.mrf.mxu0
        %v929 = vadd.f32 %v827, %v928
        %930 = vdwg.mxu0
        %v931 = vmax.f32 %v909, 0.0
        %v932 = vmax.f32 %v911, 0.0
        %v933 = vmax.f32 %v915, 0.0
        %v934 = vmax.f32 %v917, 0.0
        %v935 = vmax.f32 %v921, 0.0
        %v936 = vmax.f32 %v923, 0.0
        %v937 = vmax.f32 %v927, 0.0
        %v938 = vmax.f32 %v929, 0.0
        %v939 = vld [vmem:[%s5] sm:$0xff]
        %v940 = vld [vmem:[%s5 + $0x8] sm:$0xff]
        %v941 = vld [vmem:[%s6] sm:$0xff]
        %v942 = vld [vmem:[%s6 + $0x8] sm:$0xff]
        %944 = vset.pattern.permute.xlu0 0
        %945 = vperm.xlu0 %944, %v941
        %v946 = vpop.permute.xlu0 %945
        %949 = vset.pattern.permute.xlu0 0
        %950 = vperm.xlu0 %949, %v942
        %v951 = vpop.permute.xlu0 %950
        %v954 = vsel %vm647, %v939, 0
        %v957 = vsel %vm647, %v940, 0
        %959 = vmatprep.subr.mxu0 0.0
        %960 = vmatpush1.msra.mxu0 0.0
        %961 = vmatprep.subr.mxu0 0.0
        %962 = vmatpush1.msra.mxu0 0.0
        %963 = vmatprep.subr.mxu0 0.0
        %964 = vmatpush1.msra.mxu0 0.0
        %965 = vmatprep.subr.mxu0 0.0
        %966 = vmatpush1.msra.mxu0 0.0
        %967 = vmatprep.subr.mxu0 0.0
        %968 = vmatpush1.msra.mxu0 0.0
        %969 = vmatprep.subr.mxu0 0.0
        %970 = vmatpush1.msra.mxu0 0.0
        %971 = vmatprep.subr.mxu0 0.0
        %972 = vmatpush1.msra.mxu0 0.0
        %973 = vmatprep.subr.mxu0 0.0
        %974 = vmatpush1.msra.mxu0 0.0
        %975 = vmatprep.subr.mxu0 0.0
        %976 = vmatpush1.msra.mxu0 0.0
        %977 = vmatprep.subr.mxu0 0.0
        %978 = vmatpush1.msra.mxu0 0.0
        %979 = vmatprep.subr.mxu0 0.0
        %980 = vmatpush1.msra.mxu0 0.0
        %981 = vmatprep.subr.mxu0 0.0
        %982 = vmatpush1.msra.mxu0 0.0
        %983 = vmatprep.subr.mxu0 %v938
        %984 = vmatpush1.msra.mxu0 %v937
        %985 = vmatprep.subr.mxu0 %v936
        %986 = vmatpush1.msra.mxu0 %v935
        %987 = vmatprep.subr.mxu0 %v934
        %988 = vmatpush1.msra.mxu0 %v933
        %989 = vmatprep.subr.mxu0 %v932
        %990 = vmatpush1.msra.mxu0 %v931
        %991 = vmatprep.subr.mxu0 0.0
        %992 = vmatpush2.msra.mxu0 0.0
        %993 = vmatprep.subr.mxu0 0.0
        %994 = vmatpush2.msra.mxu0 0.0
        %995 = vmatprep.subr.mxu0 0.0
        %996 = vmatpush2.msra.mxu0 0.0
        %997 = vmatprep.subr.mxu0 0.0
        %998 = vmatpush2.msra.mxu0 0.0
        %999 = vmatprep.subr.mxu0 0.0
        %1000 = vmatpush2.msra.mxu0 0.0
        %1001 = vmatprep.subr.mxu0 0.0
        %1002 = vmatpush2.msra.mxu0 0.0
        %1003 = vmatprep.subr.mxu0 0.0
        %1004 = vmatpush2.msra.mxu0 0.0
        %1005 = vmatprep.subr.mxu0 0.0
        %1006 = vmatpush2.msra.mxu0 0.0
        %1007 = vmatprep.subr.mxu0 0.0
        %1008 = vmatpush2.msra.mxu0 0.0
        %1009 = vmatprep.subr.mxu0 0.0
        %1010 = vmatpush2.msra.mxu0 0.0
        %1011 = vmatprep.subr.mxu0 0.0
        %1012 = vmatpush2.msra.mxu0 0.0
        %1013 = vmatprep.subr.mxu0 0.0
        %1014 = vmatpush2.msra.mxu0 0.0
        %1015 = vmatprep.subr.mxu0 0.0
        %1016 = vmatpush2.msra.mxu0 0.0
        %1017 = vmatprep.subr.mxu0 0.0
        %1018 = vmatpush2.msra.mxu0 0.0
        %1019 = vmatprep.subr.mxu0 0.0
        %1020 = vmatpush2.msra.mxu0 0.0
        %1021 = vmatprep.subr.mxu0 0.0
        %1022 = vmatpush2.msra.mxu0 0.0
        %1023 = vmatprep.mubr.f32.mxu0 0.0
        %1024 = vmatmul.mubr.f32.gmra.mxu0 %v954
        %v1025 = vpop.f32.mrf.mxu0
        %v1026 = vadd.f32 %v946, %v1025
        %v1027 = vpop.f32.mrf.mxu0
        %v1028 = vadd.f32 %v946, %v1027
        %1029 = vmatprep.mubr.f32.mxu0 0.0
        %1030 = vmatmul.mubr.f32.gmra.mxu0 %v957
        %v1031 = vpop.f32.mrf.mxu0
        %v1032 = vadd.f32 %v951, %v1031
        %v1033 = vpop.f32.mrf.mxu0
        %v1034 = vadd.f32 %v951, %v1033
        %1035 = vdwg.mxu0
        %v1036 = vmax.f32 %v1026, 0.0
        %v1037 = vmax.f32 %v1028, 0.0
        %v1038 = vmax.f32 %v1032, 0.0
        %v1039 = vmax.f32 %v1034, 0.0
        %v1040 = vld [vmem:[%s7] sm:$0xff]
        %v1041 = vld [vmem:[%s8] sm:$0xff]
        %1043 = vset.pattern.permute.xlu0 0
        %1044 = vperm.xlu0 %1043, %v1041
        %v1045 = vpop.permute.xlu0 %1044
        %vm1047 = vcmask 130048
        %v1049 = vsel %vm1047, %v1040, 0
        %1051 = vmatprep.subr.mxu0 0.0
        %1052 = vmatpush1.msra.mxu0 0.0
        %1053 = vmatprep.subr.mxu0 0.0
        %1054 = vmatpush1.msra.mxu0 0.0
        %1055 = vmatprep.subr.mxu0 0.0
        %1056 = vmatpush1.msra.mxu0 0.0
        %1057 = vmatprep.subr.mxu0 0.0
        %1058 = vmatpush1.msra.mxu0 0.0
        %1059 = vmatprep.subr.mxu0 0.0
        %1060 = vmatpush1.msra.mxu0 0.0
        %1061 = vmatprep.subr.mxu0 0.0
        %1062 = vmatpush1.msra.mxu0 0.0
        %1063 = vmatprep.subr.mxu0 0.0
        %1064 = vmatpush1.msra.mxu0 0.0
        %1065 = vmatprep.subr.mxu0 0.0
        %1066 = vmatpush1.msra.mxu0 0.0
        %1067 = vmatprep.subr.mxu0 0.0
        %1068 = vmatpush1.msra.mxu0 0.0
        %1069 = vmatprep.subr.mxu0 0.0
        %1070 = vmatpush1.msra.mxu0 0.0
        %1071 = vmatprep.subr.mxu0 0.0
        %1072 = vmatpush1.msra.mxu0 0.0
        %1073 = vmatprep.subr.mxu0 0.0
        %1074 = vmatpush1.msra.mxu0 0.0
        %1075 = vmatprep.subr.mxu0 0.0
        %1076 = vmatpush1.msra.mxu0 0.0
        %1077 = vmatprep.subr.mxu0 0.0
        %1078 = vmatpush1.msra.mxu0 0.0
        %1079 = vmatprep.subr.mxu0 %v1039
        %1080 = vmatpush1.msra.mxu0 %v1038
        %1081 = vmatprep.subr.mxu0 %v1037
        %1082 = vmatpush1.msra.mxu0 %v1036
        %1083 = vmatprep.subr.mxu0 0.0
        %1084 = vmatpush2.msra.mxu0 0.0
        %1085 = vmatprep.subr.mxu0 0.0
        %1086 = vmatpush2.msra.mxu0 0.0
        %1087 = vmatprep.subr.mxu0 0.0
        %1088 = vmatpush2.msra.mxu0 0.0
        %1089 = vmatprep.subr.mxu0 0.0
        %1090 = vmatpush2.msra.mxu0 0.0
        %1091 = vmatprep.subr.mxu0 0.0
        %1092 = vmatpush2.msra.mxu0 0.0
        %1093 = vmatprep.subr.mxu0 0.0
        %1094 = vmatpush2.msra.mxu0 0.0
        %1095 = vmatprep.subr.mxu0 0.0
        %1096 = vmatpush2.msra.mxu0 0.0
        %1097 = vmatprep.subr.mxu0 0.0
        %1098 = vmatpush2.msra.mxu0 0.0
        %1099 = vmatprep.subr.mxu0 0.0
        %1100 = vmatpush2.msra.mxu0 0.0
        %1101 = vmatprep.subr.mxu0 0.0
        %1102 = vmatpush2.msra.mxu0 0.0
        %1103 = vmatprep.subr.mxu0 0.0
        %1104 = vmatpush2.msra.mxu0 0.0
        %1105 = vmatprep.subr.mxu0 0.0
        %1106 = vmatpush2.msra.mxu0 0.0
        %1107 = vmatprep.subr.mxu0 0.0
        %1108 = vmatpush2.msra.mxu0 0.0
        %1109 = vmatprep.subr.mxu0 0.0
        %1110 = vmatpush2.msra.mxu0 0.0
        %1111 = vmatprep.subr.mxu0 0.0
        %1112 = vmatpush2.msra.mxu0 0.0
        %1113 = vmatprep.subr.mxu0 0.0
        %1114 = vmatpush2.msra.mxu0 0.0
        %1115 = vmatprep.mubr.f32.mxu0 0.0
        %1116 = vmatmul.mubr.f32.gmra.mxu0 %v1049
        %v1117 = vpop.f32.mrf.mxu0
        %v1118 = vadd.f32 %v1045, %v1117
        %v1119 = vpop.f32.mrf.mxu0
        %v1120 = vadd.f32 %v1045, %v1119
        %1121 = vdwg.mxu0
        %v1122 = vmax.f32 %v1118, 0.0
        %v1123 = vmax.f32 %v1120, 0.0
        %v1124 = vld [vmem:[%s9] sm:$0xff]
        %v1125 = vld [vmem:[%s9 + $0x8] sm:$0xff]
        %v1126 = vld [vmem:[%s10] sm:$0xff]
        %v1127 = vld [vmem:[%s10 + $0x8] sm:$0xff]
        %1129 = vset.pattern.permute.xlu0 0
        %1130 = vperm.xlu0 %1129, %v1126
        %v1131 = vpop.permute.xlu0 %1130
        %1134 = vset.pattern.permute.xlu0 0
        %1135 = vperm.xlu0 %1134, %v1127
        %v1136 = vpop.permute.xlu0 %1135
        %vm1138 = vcmask 64512
        %v1140 = vsel %vm1138, %v1124, 0
        %v1143 = vsel %vm1138, %v1125, 0
        %1145 = vmatprep.subr.mxu0 0.0
        %1146 = vmatpush1.msra.mxu0 0.0
        %1147 = vmatprep.subr.mxu0 0.0
        %1148 = vmatpush1.msra.mxu0 0.0
        %1149 = vmatprep.subr.mxu0 0.0
        %1150 = vmatpush1.msra.mxu0 0.0
        %1151 = vmatprep.subr.mxu0 0.0
        %1152 = vmatpush1.msra.mxu0 0.0
        %1153 = vmatprep.subr.mxu0 0.0
        %1154 = vmatpush1.msra.mxu0 0.0
        %1155 = vmatprep.subr.mxu0 0.0
        %1156 = vmatpush1.msra.mxu0 0.0
        %1157 = vmatprep.subr.mxu0 0.0
        %1158 = vmatpush1.msra.mxu0 0.0
        %1159 = vmatprep.subr.mxu0 0.0
        %1160 = vmatpush1.msra.mxu0 0.0
        %1161 = vmatprep.subr.mxu0 0.0
        %1162 = vmatpush1.msra.mxu0 0.0
        %1163 = vmatprep.subr.mxu0 0.0
        %1164 = vmatpush1.msra.mxu0 0.0
        %1165 = vmatprep.subr.mxu0 0.0
        %1166 = vmatpush1.msra.mxu0 0.0
        %1167 = vmatprep.subr.mxu0 0.0
        %1168 = vmatpush1.msra.mxu0 0.0
        %1169 = vmatprep.subr.mxu0 0.0
        %1170 = vmatpush1.msra.mxu0 0.0
        %1171 = vmatprep.subr.mxu0 0.0
        %1172 = vmatpush1.msra.mxu0 0.0
        %1173 = vmatprep.subr.mxu0 0.0
        %1174 = vmatpush1.msra.mxu0 0.0
        %1175 = vmatprep.subr.mxu0 %v1123
        %1176 = vmatpush1.msra.mxu0 %v1122
        %1177 = vmatprep.subr.mxu0 0.0
        %1178 = vmatpush2.msra.mxu0 0.0
        %1179 = vmatprep.subr.mxu0 0.0
        %1180 = vmatpush2.msra.mxu0 0.0
        %1181 = vmatprep.subr.mxu0 0.0
        %1182 = vmatpush2.msra.mxu0 0.0
        %1183 = vmatprep.subr.mxu0 0.0
        %1184 = vmatpush2.msra.mxu0 0.0
        %1185 = vmatprep.subr.mxu0 0.0
        %1186 = vmatpush2.msra.mxu0 0.0
        %1187 = vmatprep.subr.mxu0 0.0
        %1188 = vmatpush2.msra.mxu0 0.0
        %1189 = vmatprep.subr.mxu0 0.0
        %1190 = vmatpush2.msra.mxu0 0.0
        %1191 = vmatprep.subr.mxu0 0.0
        %1192 = vmatpush2.msra.mxu0 0.0
        %1193 = vmatprep.subr.mxu0 0.0
        %1194 = vmatpush2.msra.mxu0 0.0
        %1195 = vmatprep.subr.mxu0 0.0
        %1196 = vmatpush2.msra.mxu0 0.0
        %1197 = vmatprep.subr.mxu0 0.0
        %1198 = vmatpush2.msra.mxu0 0.0
        %1199 = vmatprep.subr.mxu0 0.0
        %1200 = vmatpush2.msra.mxu0 0.0
        %1201 = vmatprep.subr.mxu0 0.0
        %1202 = vmatpush2.msra.mxu0 0.0
        %1203 = vmatprep.subr.mxu0 0.0
        %1204 = vmatpush2.msra.mxu0 0.0
        %1205 = vmatprep.subr.mxu0 0.0
        %1206 = vmatpush2.msra.mxu0 0.0
        %1207 = vmatprep.subr.mxu0 0.0
        %1208 = vmatpush2.msra.mxu0 0.0
        %1209 = vmatprep.mubr.f32.mxu0 0.0
        %1210 = vmatmul.mubr.f32.gmra.mxu0 %v1140
        %v1211 = vpop.f32.mrf.mxu0
        %v1212 = vadd.f32 %v1131, %v1211
        %v1213 = vpop.f32.mrf.mxu0
        %v1214 = vadd.f32 %v1131, %v1213
        %1215 = vmatprep.mubr.f32.mxu0 0.0
        %1216 = vmatmul.mubr.f32.gmra.mxu0 %v1143
        %v1217 = vpop.f32.mrf.mxu0
        %v1218 = vadd.f32 %v1136, %v1217
        %v1219 = vpop.f32.mrf.mxu0
        %v1220 = vadd.f32 %v1136, %v1219
        %1221 = vdwg.mxu0
        %v1222 = vmax.f32 %v1212, 0.0
        %v1223 = vmax.f32 %v1214, 0.0
        %v1224 = vmax.f32 %v1218, 0.0
        %v1225 = vmax.f32 %v1220, 0.0
        %v1226 = vld [vmem:[%s11] sm:$0xff]
        %v1227 = vld [vmem:[%s11 + $0x8] sm:$0xff]
        %v1228 = vld [vmem:[%s11 + $0x10] sm:$0xff]
        %v1229 = vld [vmem:[%s11 + $0x18] sm:$0xff]
        %v1230 = vld [vmem:[%s12] sm:$0xff]
        %v1231 = vld [vmem:[%s12 + $0x8] sm:$0xff]
        %v1232 = vld [vmem:[%s12 + $0x10] sm:$0xff]
        %v1233 = vld [vmem:[%s12 + $0x18] sm:$0xff]
        %1235 = vset.pattern.permute.xlu0 0
        %1236 = vperm.xlu0 %1235, %v1230
        %v1237 = vpop.permute.xlu0 %1236
        %1240 = vset.pattern.permute.xlu0 0
        %1241 = vperm.xlu0 %1240, %v1231
        %v1242 = vpop.permute.xlu0 %1241
        %1245 = vset.pattern.permute.xlu0 0
        %1246 = vperm.xlu0 %1245, %v1232
        %v1247 = vpop.permute.xlu0 %1246
        %1250 = vset.pattern.permute.xlu0 0
        %1251 = vperm.xlu0 %1250, %v1233
        %v1252 = vpop.permute.xlu0 %1251
        %v1255 = vsel %vm1047, %v1226, 0
        %v1258 = vsel %vm1047, %v1227, 0
        %v1261 = vsel %vm1047, %v1228, 0
        %v1264 = vsel %vm1047, %v1229, 0
        %1266 = vmatprep.subr.mxu0 0.0
        %1267 = vmatpush1.msra.mxu0 0.0
        %1268 = vmatprep.subr.mxu0 0.0
        %1269 = vmatpush1.msra.mxu0 0.0
        %1270 = vmatprep.subr.mxu0 0.0
        %1271 = vmatpush1.msra.mxu0 0.0
        %1272 = vmatprep.subr.mxu0 0.0
        %1273 = vmatpush1.msra.mxu0 0.0
        %1274 = vmatprep.subr.mxu0 0.0
        %1275 = vmatpush1.msra.mxu0 0.0
        %1276 = vmatprep.subr.mxu0 0.0
        %1277 = vmatpush1.msra.mxu0 0.0
        %1278 = vmatprep.subr.mxu0 0.0
        %1279 = vmatpush1.msra.mxu0 0.0
        %1280 = vmatprep.subr.mxu0 0.0
        %1281 = vmatpush1.msra.mxu0 0.0
        %1282 = vmatprep.subr.mxu0 0.0
        %1283 = vmatpush1.msra.mxu0 0.0
        %1284 = vmatprep.subr.mxu0 0.0
        %1285 = vmatpush1.msra.mxu0 0.0
        %1286 = vmatprep.subr.mxu0 0.0
        %1287 = vmatpush1.msra.mxu0 0.0
        %1288 = vmatprep.subr.mxu0 0.0
        %1289 = vmatpush1.msra.mxu0 0.0
        %1290 = vmatprep.subr.mxu0 0.0
        %1291 = vmatpush1.msra.mxu0 0.0
        %1292 = vmatprep.subr.mxu0 0.0
        %1293 = vmatpush1.msra.mxu0 0.0
        %1294 = vmatprep.subr.mxu0 %v1225
        %1295 = vmatpush1.msra.mxu0 %v1224
        %1296 = vmatprep.subr.mxu0 %v1223
        %1297 = vmatpush1.msra.mxu0 %v1222
        %1298 = vmatprep.subr.mxu0 0.0
        %1299 = vmatpush2.msra.mxu0 0.0
        %1300 = vmatprep.subr.mxu0 0.0
        %1301 = vmatpush2.msra.mxu0 0.0
        %1302 = vmatprep.subr.mxu0 0.0
        %1303 = vmatpush2.msra.mxu0 0.0
        %1304 = vmatprep.subr.mxu0 0.0
        %1305 = vmatpush2.msra.mxu0 0.0
        %1306 = vmatprep.subr.mxu0 0.0
        %1307 = vmatpush2.msra.mxu0 0.0
        %1308 = vmatprep.subr.mxu0 0.0
        %1309 = vmatpush2.msra.mxu0 0.0
        %1310 = vmatprep.subr.mxu0 0.0
        %1311 = vmatpush2.msra.mxu0 0.0
        %1312 = vmatprep.subr.mxu0 0.0
        %1313 = vmatpush2.msra.mxu0 0.0
        %1314 = vmatprep.subr.mxu0 0.0
        %1315 = vmatpush2.msra.mxu0 0.0
        %1316 = vmatprep.subr.mxu0 0.0
        %1317 = vmatpush2.msra.mxu0 0.0
        %1318 = vmatprep.subr.mxu0 0.0
        %1319 = vmatpush2.msra.mxu0 0.0
        %1320 = vmatprep.subr.mxu0 0.0
        %1321 = vmatpush2.msra.mxu0 0.0
        %1322 = vmatprep.subr.mxu0 0.0
        %1323 = vmatpush2.msra.mxu0 0.0
        %1324 = vmatprep.subr.mxu0 0.0
        %1325 = vmatpush2.msra.mxu0 0.0
        %1326 = vmatprep.subr.mxu0 0.0
        %1327 = vmatpush2.msra.mxu0 0.0
        %1328 = vmatprep.subr.mxu0 0.0
        %1329 = vmatpush2.msra.mxu0 0.0
        %1330 = vmatprep.mubr.f32.mxu0 0.0
        %1331 = vmatmul.mubr.f32.gmra.mxu0 %v1255
        %v1332 = vpop.f32.mrf.mxu0
        %v1333 = vadd.f32 %v1237, %v1332
        %v1334 = vpop.f32.mrf.mxu0
        %v1335 = vadd.f32 %v1237, %v1334
        %1336 = vmatprep.mubr.f32.mxu0 0.0
        %1337 = vmatmul.mubr.f32.gmra.mxu0 %v1258
        %v1338 = vpop.f32.mrf.mxu0
        %v1339 = vadd.f32 %v1242, %v1338
        %v1340 = vpop.f32.mrf.mxu0
        %v1341 = vadd.f32 %v1242, %v1340
        %1342 = vmatprep.mubr.f32.mxu0 0.0
        %1343 = vmatmul.mubr.f32.gmra.mxu0 %v1261
        %v1344 = vpop.f32.mrf.mxu0
        %v1345 = vadd.f32 %v1247, %v1344
        %v1346 = vpop.f32.mrf.mxu0
        %v1347 = vadd.f32 %v1247, %v1346
        %1348 = vmatprep.mubr.f32.mxu0 0.0
        %1349 = vmatmul.mubr.f32.gmra.mxu0 %v1264
        %v1350 = vpop.f32.mrf.mxu0
        %v1351 = vadd.f32 %v1252, %v1350
        %v1352 = vpop.f32.mrf.mxu0
        %v1353 = vadd.f32 %v1252, %v1352
        %1354 = vdwg.mxu0
        %v1355 = vmax.f32 %v1333, 0.0
        %v1356 = vmax.f32 %v1335, 0.0
        %v1357 = vmax.f32 %v1339, 0.0
        %v1358 = vmax.f32 %v1341, 0.0
        %v1359 = vmax.f32 %v1345, 0.0
        %v1360 = vmax.f32 %v1347, 0.0
        %v1361 = vmax.f32 %v1351, 0.0
        %v1362 = vmax.f32 %v1353, 0.0
        %v1363 = vld [vmem:[%s13] sm:$0xff]
        %v1364 = vld [vmem:[%s13 + $0x8] sm:$0xff]
        %v1365 = vld [vmem:[%s13 + $0x10] sm:$0xff]
        %v1366 = vld [vmem:[%s13 + $0x18] sm:$0xff]
        %v1367 = vld [vmem:[%s13 + $0x20] sm:$0xff]
        %v1368 = vld [vmem:[%s13 + $0x28] sm:$0xff]
        %v1369 = vld [vmem:[%s13 + $0x30] sm:$0xff]
        %v1370 = vld [vmem:[%s13 + $0x38] sm:$0xff]
        %v1371 = vld [vmem:[%s14] sm:$0xff]
        %v1372 = vld [vmem:[%s14 + $0x8] sm:$0xff]
        %v1373 = vld [vmem:[%s14 + $0x10] sm:$0xff]
        %v1374 = vld [vmem:[%s14 + $0x18] sm:$0xff]
        %v1375 = vld [vmem:[%s14 + $0x20] sm:$0xff]
        %v1376 = vld [vmem:[%s14 + $0x28] sm:$0xff]
        %v1377 = vld [vmem:[%s14 + $0x30] sm:$0xff]
        %v1378 = vld [vmem:[%s14 + $0x38] sm:$0xff]
        %1380 = vset.pattern.permute.xlu0 0
        %1381 = vperm.xlu0 %1380, %v1371
        %v1382 = vpop.permute.xlu0 %1381
        %1385 = vset.pattern.permute.xlu0 0
        %1386 = vperm.xlu0 %1385, %v1372
        %v1387 = vpop.permute.xlu0 %1386
        %1390 = vset.pattern.permute.xlu0 0
        %1391 = vperm.xlu0 %1390, %v1373
        %v1392 = vpop.permute.xlu0 %1391
        %1395 = vset.pattern.permute.xlu0 0
        %1396 = vperm.xlu0 %1395, %v1374
        %v1397 = vpop.permute.xlu0 %1396
        %1400 = vset.pattern.permute.xlu0 0
        %1401 = vperm.xlu0 %1400, %v1375
        %v1402 = vpop.permute.xlu0 %1401
        %1405 = vset.pattern.permute.xlu0 0
        %1406 = vperm.xlu0 %1405, %v1376
        %v1407 = vpop.permute.xlu0 %1406
        %1410 = vset.pattern.permute.xlu0 0
        %1411 = vperm.xlu0 %1410, %v1377
        %v1412 = vpop.permute.xlu0 %1411
        %1415 = vset.pattern.permute.xlu0 0
        %1416 = vperm.xlu0 %1415, %v1378
        %v1417 = vpop.permute.xlu0 %1416
        %v1420 = vsel %vm647, %v1363, 0
        %v1423 = vsel %vm647, %v1364, 0
        %v1426 = vsel %vm647, %v1365, 0
        %v1429 = vsel %vm647, %v1366, 0
        %v1432 = vsel %vm647, %v1367, 0
        %v1435 = vsel %vm647, %v1368, 0
        %v1438 = vsel %vm647, %v1369, 0
        %v1441 = vsel %vm647, %v1370, 0
        %1443 = vmatprep.subr.mxu0 0.0
        %1444 = vmatpush1.msra.mxu0 0.0
        %1445 = vmatprep.subr.mxu0 0.0
        %1446 = vmatpush1.msra.mxu0 0.0
        %1447 = vmatprep.subr.mxu0 0.0
        %1448 = vmatpush1.msra.mxu0 0.0
        %1449 = vmatprep.subr.mxu0 0.0
        %1450 = vmatpush1.msra.mxu0 0.0
        %1451 = vmatprep.subr.mxu0 0.0
        %1452 = vmatpush1.msra.mxu0 0.0
        %1453 = vmatprep.subr.mxu0 0.0
        %1454 = vmatpush1.msra.mxu0 0.0
        %1455 = vmatprep.subr.mxu0 0.0
        %1456 = vmatpush1.msra.mxu0 0.0
        %1457 = vmatprep.subr.mxu0 0.0
        %1458 = vmatpush1.msra.mxu0 0.0
        %1459 = vmatprep.subr.mxu0 0.0
        %1460 = vmatpush1.msra.mxu0 0.0
        %1461 = vmatprep.subr.mxu0 0.0
        %1462 = vmatpush1.msra.mxu0 0.0
        %1463 = vmatprep.subr.mxu0 0.0
        %1464 = vmatpush1.msra.mxu0 0.0
        %1465 = vmatprep.subr.mxu0 0.0
        %1466 = vmatpush1.msra.mxu0 0.0
        %1467 = vmatprep.subr.mxu0 %v1362
        %1468 = vmatpush1.msra.mxu0 %v1361
        %1469 = vmatprep.subr.mxu0 %v1360
        %1470 = vmatpush1.msra.mxu0 %v1359
        %1471 = vmatprep.subr.mxu0 %v1358
        %1472 = vmatpush1.msra.mxu0 %v1357
        %1473 = vmatprep.subr.mxu0 %v1356
        %1474 = vmatpush1.msra.mxu0 %v1355
        %1475 = vmatprep.subr.mxu0 0.0
        %1476 = vmatpush2.msra.mxu0 0.0
        %1477 = vmatprep.subr.mxu0 0.0
        %1478 = vmatpush2.msra.mxu0 0.0
        %1479 = vmatprep.subr.mxu0 0.0
        %1480 = vmatpush2.msra.mxu0 0.0
        %1481 = vmatprep.subr.mxu0 0.0
        %1482 = vmatpush2.msra.mxu0 0.0
        %1483 = vmatprep.subr.mxu0 0.0
        %1484 = vmatpush2.msra.mxu0 0.0
        %1485 = vmatprep.subr.mxu0 0.0
        %1486 = vmatpush2.msra.mxu0 0.0
        %1487 = vmatprep.subr.mxu0 0.0
        %1488 = vmatpush2.msra.mxu0 0.0
        %1489 = vmatprep.subr.mxu0 0.0
        %1490 = vmatpush2.msra.mxu0 0.0
        %1491 = vmatprep.subr.mxu0 0.0
        %1492 = vmatpush2.msra.mxu0 0.0
        %1493 = vmatprep.subr.mxu0 0.0
        %1494 = vmatpush2.msra.mxu0 0.0
        %1495 = vmatprep.subr.mxu0 0.0
        %1496 = vmatpush2.msra.mxu0 0.0
        %1497 = vmatprep.subr.mxu0 0.0
        %1498 = vmatpush2.msra.mxu0 0.0
        %1499 = vmatprep.subr.mxu0 0.0
        %1500 = vmatpush2.msra.mxu0 0.0
        %1501 = vmatprep.subr.mxu0 0.0
        %1502 = vmatpush2.msra.mxu0 0.0
        %1503 = vmatprep.subr.mxu0 0.0
        %1504 = vmatpush2.msra.mxu0 0.0
        %1505 = vmatprep.subr.mxu0 0.0
        %1506 = vmatpush2.msra.mxu0 0.0
        %1507 = vmatprep.mubr.f32.mxu0 0.0
        %1508 = vmatmul.mubr.f32.gmra.mxu0 %v1420
        %v1509 = vpop.f32.mrf.mxu0
        %v1510 = vadd.f32 %v1382, %v1509
        %v1511 = vpop.f32.mrf.mxu0
        %v1512 = vadd.f32 %v1382, %v1511
        %1513 = vmatprep.mubr.f32.mxu0 0.0
        %1514 = vmatmul.mubr.f32.gmra.mxu0 %v1423
        %v1515 = vpop.f32.mrf.mxu0
        %v1516 = vadd.f32 %v1387, %v1515
        %v1517 = vpop.f32.mrf.mxu0
        %v1518 = vadd.f32 %v1387, %v1517
        %1519 = vmatprep.mubr.f32.mxu0 0.0
        %1520 = vmatmul.mubr.f32.gmra.mxu0 %v1426
        %v1521 = vpop.f32.mrf.mxu0
        %v1522 = vadd.f32 %v1392, %v1521
        %v1523 = vpop.f32.mrf.mxu0
        %v1524 = vadd.f32 %v1392, %v1523
        %1525 = vmatprep.mubr.f32.mxu0 0.0
        %1526 = vmatmul.mubr.f32.gmra.mxu0 %v1429
        %v1527 = vpop.f32.mrf.mxu0
        %v1528 = vadd.f32 %v1397, %v1527
        %v1529 = vpop.f32.mrf.mxu0
        %v1530 = vadd.f32 %v1397, %v1529
        %1531 = vmatprep.mubr.f32.mxu0 0.0
        %1532 = vmatmul.mubr.f32.gmra.mxu0 %v1432
        %v1533 = vpop.f32.mrf.mxu0
        %v1534 = vadd.f32 %v1402, %v1533
        %v1535 = vpop.f32.mrf.mxu0
        %v1536 = vadd.f32 %v1402, %v1535
        %1537 = vmatprep.mubr.f32.mxu0 0.0
        %1538 = vmatmul.mubr.f32.gmra.mxu0 %v1435
        %v1539 = vpop.f32.mrf.mxu0
        %v1540 = vadd.f32 %v1407, %v1539
        %v1541 = vpop.f32.mrf.mxu0
        %v1542 = vadd.f32 %v1407, %v1541
        %1543 = vmatprep.mubr.f32.mxu0 0.0
        %1544 = vmatmul.mubr.f32.gmra.mxu0 %v1438
        %v1545 = vpop.f32.mrf.mxu0
        %v1546 = vadd.f32 %v1412, %v1545
        %v1547 = vpop.f32.mrf.mxu0
        %v1548 = vadd.f32 %v1412, %v1547
        %1549 = vmatprep.mubr.f32.mxu0 0.0
        %1550 = vmatmul.mubr.f32.gmra.mxu0 %v1441
        %v1551 = vpop.f32.mrf.mxu0
        %v1552 = vadd.f32 %v1417, %v1551
        %v1553 = vpop.f32.mrf.mxu0
        %v1554 = vadd.f32 %v1417, %v1553
        %1555 = vdwg.mxu0
        %v1556 = vmax.f32 %v1510, 0.0
        %v1557 = vmax.f32 %v1512, 0.0
        %v1558 = vmax.f32 %v1516, 0.0
        %v1559 = vmax.f32 %v1518, 0.0
        %v1560 = vmax.f32 %v1522, 0.0
        %v1561 = vmax.f32 %v1524, 0.0
        %v1562 = vmax.f32 %v1528, 0.0
        %v1563 = vmax.f32 %v1530, 0.0
        %v1564 = vmax.f32 %v1534, 0.0
        %v1565 = vmax.f32 %v1536, 0.0
        %v1566 = vmax.f32 %v1540, 0.0
        %v1567 = vmax.f32 %v1542, 0.0
        %v1568 = vmax.f32 %v1546, 0.0
        %v1569 = vmax.f32 %v1548, 0.0
        %v1570 = vmax.f32 %v1552, 0.0
        %v1571 = vmax.f32 %v1554, 0.0
        %v1572 = vld [vmem:[%s15] sm:$0xff]
        %v1573 = vld [vmem:[%s15 + $0x8] sm:$0xff]
        %v1574 = vld [vmem:[%s15 + $0x10] sm:$0xff]
        %v1575 = vld [vmem:[%s15 + $0x18] sm:$0xff]
        %v1576 = vld [vmem:[%s16] sm:$0xff]
        %v1577 = vld [vmem:[%s16 + $0x8] sm:$0xff]
        %v1578 = vld [vmem:[%s16 + $0x10] sm:$0xff]
        %v1579 = vld [vmem:[%s16 + $0x18] sm:$0xff]
        %1581 = vset.pattern.permute.xlu0 0
        %1582 = vperm.xlu0 %1581, %v1576
        %v1583 = vpop.permute.xlu0 %1582
        %1586 = vset.pattern.permute.xlu0 0
        %1587 = vperm.xlu0 %1586, %v1577
        %v1588 = vpop.permute.xlu0 %1587
        %1591 = vset.pattern.permute.xlu0 0
        %1592 = vperm.xlu0 %1591, %v1578
        %v1593 = vpop.permute.xlu0 %1592
        %1596 = vset.pattern.permute.xlu0 0
        %1597 = vperm.xlu0 %1596, %v1579
        %v1598 = vpop.permute.xlu0 %1597
        %v1601 = vsel %vm829, %v1572, 0
        %v1604 = vsel %vm829, %v1573, 0
        %v1607 = vsel %vm829, %v1574, 0
        %v1610 = vsel %vm829, %v1575, 0
        %1612 = vmatprep.subr.mxu0 0.0
        %1613 = vmatpush1.msra.mxu0 0.0
        %1614 = vmatprep.subr.mxu0 0.0
        %1615 = vmatpush1.msra.mxu0 0.0
        %1616 = vmatprep.subr.mxu0 0.0
        %1617 = vmatpush1.msra.mxu0 0.0
        %1618 = vmatprep.subr.mxu0 0.0
        %1619 = vmatpush1.msra.mxu0 0.0
        %1620 = vmatprep.subr.mxu0 0.0
        %1621 = vmatpush1.msra.mxu0 0.0
        %1622 = vmatprep.subr.mxu0 0.0
        %1623 = vmatpush1.msra.mxu0 0.0
        %1624 = vmatprep.subr.mxu0 0.0
        %1625 = vmatpush1.msra.mxu0 0.0
        %1626 = vmatprep.subr.mxu0 0.0
        %1627 = vmatpush1.msra.mxu0 0.0
        %1628 = vmatprep.subr.mxu0 %v1571
        %1629 = vmatpush1.msra.mxu0 %v1570
        %1630 = vmatprep.subr.mxu0 %v1569
        %1631 = vmatpush1.msra.mxu0 %v1568
        %1632 = vmatprep.subr.mxu0 %v1567
        %1633 = vmatpush1.msra.mxu0 %v1566
        %1634 = vmatprep.subr.mxu0 %v1565
        %1635 = vmatpush1.msra.mxu0 %v1564
        %1636 = vmatprep.subr.mxu0 %v1563
        %1637 = vmatpush1.msra.mxu0 %v1562
        %1638 = vmatprep.subr.mxu0 %v1561
        %1639 = vmatpush1.msra.mxu0 %v1560
        %1640 = vmatprep.subr.mxu0 %v1559
        %1641 = vmatpush1.msra.mxu0 %v1558
        %1642 = vmatprep.subr.mxu0 %v1557
        %1643 = vmatpush1.msra.mxu0 %v1556
        %1644 = vmatprep.subr.mxu0 0.0
        %1645 = vmatpush2.msra.mxu0 0.0
        %1646 = vmatprep.subr.mxu0 0.0
        %1647 = vmatpush2.msra.mxu0 0.0
        %1648 = vmatprep.subr.mxu0 0.0
        %1649 = vmatpush2.msra.mxu0 0.0
        %1650 = vmatprep.subr.mxu0 0.0
        %1651 = vmatpush2.msra.mxu0 0.0
        %1652 = vmatprep.subr.mxu0 0.0
        %1653 = vmatpush2.msra.mxu0 0.0
        %1654 = vmatprep.subr.mxu0 0.0
        %1655 = vmatpush2.msra.mxu0 0.0
        %1656 = vmatprep.subr.mxu0 0.0
        %1657 = vmatpush2.msra.mxu0 0.0
        %1658 = vmatprep.subr.mxu0 0.0
        %1659 = vmatpush2.msra.mxu0 0.0
        %1660 = vmatprep.subr.mxu0 0.0
        %1661 = vmatpush2.msra.mxu0 0.0
        %1662 = vmatprep.subr.mxu0 0.0
        %1663 = vmatpush2.msra.mxu0 0.0
        %1664 = vmatprep.subr.mxu0 0.0
        %1665 = vmatpush2.msra.mxu0 0.0
        %1666 = vmatprep.subr.mxu0 0.0
        %1667 = vmatpush2.msra.mxu0 0.0
        %1668 = vmatprep.subr.mxu0 0.0
        %1669 = vmatpush2.msra.mxu0 0.0
        %1670 = vmatprep.subr.mxu0 0.0
        %1671 = vmatpush2.msra.mxu0 0.0
        %1672 = vmatprep.subr.mxu0 0.0
        %1673 = vmatpush2.msra.mxu0 0.0
        %1674 = vmatprep.subr.mxu0 0.0
        %1675 = vmatpush2.msra.mxu0 0.0
        %1676 = vmatprep.mubr.f32.mxu0 0.0
        %1677 = vmatmul.mubr.f32.gmra.mxu0 %v1601
        %v1678 = vpop.f32.mrf.mxu0
        %v1679 = vadd.f32 %v1583, %v1678
        %v1680 = vpop.f32.mrf.mxu0
        %v1681 = vadd.f32 %v1583, %v1680
        %1682 = vmatprep.mubr.f32.mxu0 0.0
        %1683 = vmatmul.mubr.f32.gmra.mxu0 %v1604
        %v1684 = vpop.f32.mrf.mxu0
        %v1685 = vadd.f32 %v1588, %v1684
        %v1686 = vpop.f32.mrf.mxu0
        %v1687 = vadd.f32 %v1588, %v1686
        %1688 = vmatprep.mubr.f32.mxu0 0.0
        %1689 = vmatmul.mubr.f32.gmra.mxu0 %v1607
        %v1690 = vpop.f32.mrf.mxu0
        %v1691 = vadd.f32 %v1593, %v1690
        %v1692 = vpop.f32.mrf.mxu0
        %v1693 = vadd.f32 %v1593, %v1692
        %1694 = vmatprep.mubr.f32.mxu0 0.0
        %1695 = vmatmul.mubr.f32.gmra.mxu0 %v1610
        %v1696 = vpop.f32.mrf.mxu0
        %v1697 = vadd.f32 %v1598, %v1696
        %v1698 = vpop.f32.mrf.mxu0
        %v1699 = vadd.f32 %v1598, %v1698
        %1700 = vdwg.mxu0
        %1701 = vst [vmem:[%s580] sm:$0xff] %v1679
        %1702 = vst [vmem:[%s580 + $0x8] sm:$0xff] %v1681
        %1703 = vst [vmem:[%s580 + $0x10] sm:$0xff] %v1685
        %1704 = vst [vmem:[%s580 + $0x18] sm:$0xff] %v1687
        %1705 = vst [vmem:[%s580 + $0x20] sm:$0xff] %v1691
        %1706 = vst [vmem:[%s580 + $0x28] sm:$0xff] %v1693
        %1707 = vst [vmem:[%s580 + $0x30] sm:$0xff] %v1697
        %1708 = vst [vmem:[%s580 + $0x38] sm:$0xff] %v1699
        %s1709 = sand.u32 %s401, 1
        %s1710 = scalar_lea.sflag [#allocation4], %s1709
        %s1711 = sand.u32 %s401, 1
        %s1712 = smul.addr %s1711, 64
        %s1713 = scalar_lea.vmem [#allocation3], %s1712
        // Predicated region
        $region112: #{ae_forward.1} parent=106 // pred_check
          %p1714 = pneg %p411
        $region113: #{ae_forward.1} parent=106 // pred_check_branch
          %1716 = sbr.rel (%p1714) target = $region115
        $region114: #{ae_forward.1} parent=106 // pred_region
          %s1717 = smul.u32 2, %s31
          %s1719 = ssub.s32 1024, 1024
          %1720 = vsyncadd %s1710, %s1719
          %s1721 = smul.addr %s1717, 128
          %s1722 = scalar_lea.hbm %s17, %s1721
          %s1723 = sshll.u32 %s1713, 4
          %s1724 = int_to_ptr.vmem [resolvable:$true] %s1723
          %1729 = dma.vmem_to_hbm [thread:$0]  %s1724, 1024, %s1722, %s1710, 256, 512, 16
        $region115: #{ae_forward.1} parent=106 // pred_fallthru
          _
      $region107: #{ae_forward.1} parent=5 // pred_fallthru
        _
      %p1730 = scmp.le.s32.totalorder 2, %s26
      // Predicated region
      $region116: #{ae_forward.1} parent=5 // pred_check
        %p1731 = pneg %p1730
      $region117: #{ae_forward.1} parent=5 // pred_check_branch
        %1733 = sbr.rel (%p1731) target = $region119
      $region118: #{ae_forward.1} parent=5 // pred_region
        %s1734 = ssub.s32 %s26, 2
        // Predicated region
        $region120: #{ae_forward.1} parent=118 // pred_check
          %p1735 = pneg %p417
        $region121: #{ae_forward.1} parent=118 // pred_check_branch
          %1737 = sbr.rel (%p1735) target = $region123
        $region122: #{ae_forward.1} parent=118 // pred_region
          %s1738 = sand.u32 %s402, 1
          %s1739 = scalar_lea.sflag [#allocation4], %s1738
          %s1740 = sand.u32 %s402, 1
          %s1741 = smul.addr %s1740, 64
          %s1742 = scalar_lea.vmem [#allocation3], %s1741
          %1743 = dma.done %s1739, 1024
        $region123: #{ae_forward.1} parent=118 // pred_fallthru
          _
      $region119: #{ae_forward.1} parent=5 // pred_fallthru
        _
    $region6: #{ae_forward.1} parent=1 // loop_footer
      %s30 = sadd.s32 1, %s26
    $region7: #{ae_forward.1} parent=1 // loop_footer_branch
      %25 = sbr.rel target = $region3
    $region8: #{ae_forward.1} parent=1 // loop_exit
      _
    %1744 = vsyncpa [#allocation4], 1
    %s1745 = scalar_lea.sflag [#allocation4], 1
    %1746 = vsyncpa %s1745, 1

</llo_original>
